<compile_context>
chip_gen: v5e
topology: v5e:2x2
jax: 0.10.0
libtpu: 0.0.40
codegen_flags: <defaults>
</compile_context>

<pallas_src>
import functools

import jax
import jax.numpy as jnp
from jax.experimental import pallas as pl
from jax.experimental.pallas import tpu as pltpu


# ---------------------------------------------------------------------------
# Fused kernel: stacked LSTM layers + final Linear, everything VMEM-resident.
# ---------------------------------------------------------------------------
def _fused_lstm_fc_kernel(*refs, n_layers, hidden_dims, seq_len, batch):
    # Unpack refs:
    #   x2d, (wih0, whh0, b0), [(wih_l, whh_l, b_l)]*, fc_w, fc_b, out
    x_ref = refs[0]
    wih0_ref, whh0_ref, b0_ref = refs[1], refs[2], refs[3]
    idx = 4
    rest_refs = []
    for _ in range(1, n_layers):
        rest_refs.append((refs[idx], refs[idx + 1], refs[idx + 2]))
        idx += 3
    fcw_ref, fcb_ref = refs[idx], refs[idx + 1]
    out_ref = refs[idx + 2]

    B = batch
    S = seq_len
    H0 = hidden_dims[0]

    def lstm_cell(gates, c_prev, H):
        # Gate column order is (i, f, o | g): one sigmoid over 3H lanes, one
        # tanh over H lanes, plus tanh(c_new) -> 3 EUP pushes per cell.
        sg = jax.nn.sigmoid(gates[:, :3 * H])
        i_g = sg[:, 0 * H:1 * H]
        f_g = sg[:, 1 * H:2 * H]
        o_g = sg[:, 2 * H:3 * H]
        g_g = jnp.tanh(gates[:, 3 * H:4 * H])
        c_new = f_g * c_prev + i_g * g_g
        h_new = o_g * jnp.tanh(c_new)
        return h_new, c_new

    # --- Layer-0 input projection for ALL timesteps: one matmul, one bias. ---
    # x_ref is (S*B, E) time-major; gx_all is (S*B, 4H0).
    gx_all = (
        jnp.dot(x_ref[...], wih0_ref[...], preferred_element_type=jnp.float32)
        + b0_ref[...]
    )

    whh0 = whh0_ref[...]                               # (H0, 4H0)

    # Hoist weight loads and bias broadcasts for layers >= 1 out of the loop.
    rest_w = []
    for l in range(1, n_layers):
        wih_r, whh_r, b_r = rest_refs[l - 1]
        b_bcast = jnp.broadcast_to(b_r[0], (B, 4 * hidden_dims[l]))
        rest_w.append((wih_r[...], whh_r[...], b_bcast))

    # Carried states as traced values (vreg-resident, no scratch / HBM traffic).
    hs = [jnp.zeros((B, h), jnp.float32) for h in hidden_dims]
    cs = [jnp.zeros((B, h), jnp.float32) for h in hidden_dims]

    for t in range(S):  # static unroll: small fixed trip count
        # Layer 0: only h_prev @ W_hh remains on the serial critical path.
        g0 = gx_all[t * B:(t + 1) * B, :] + jnp.dot(
            hs[0], whh0, preferred_element_type=jnp.float32)
        hs[0], cs[0] = lstm_cell(g0, cs[0], H0)
        inp = hs[0]
        # Layers 1..L-1: two small dots, no per-step concatenate on the chain.
        for l in range(1, n_layers):
            wih_l, whh_l, b_l = rest_w[l - 1]
            Hl = hidden_dims[l]
            g = (jnp.dot(inp, wih_l, preferred_element_type=jnp.float32)
                 + jnp.dot(hs[l], whh_l, preferred_element_type=jnp.float32)
                 + b_l)
            hs[l], cs[l] = lstm_cell(g, cs[l], Hl)
            inp = hs[l]

    # Fused FC head on the final hidden state only (Identity activation).
    out_ref[...] = (
        jnp.dot(hs[-1], fcw_ref[...], preferred_element_type=jnp.float32)
        + fcb_ref[0]
    )


def fused_base_lstm_call(x, layer0, layers_rest, fc_w, fc_b):
    """Single pallas_call running the whole forward.

    x:           (B, S, E) float32, batch-first (PyTorch convention).
    layer0:      (w_ih (E,4H0), w_hh (H0,4H0), b (1,4H0)), gate cols (i,f,o,g)
    layers_rest: list of (w_ih (H_{l-1},4H_l), w_hh (H_l,4H_l), b (1,4H_l))
    fc_w:        (H_last, Dout);  fc_b: (1, Dout)
    """
    B, S, E = x.shape
    w_ih0, w_hh0, b0 = layer0
    hidden_dims = [w_hh0.shape[0]] + [whh.shape[0] for (_, whh, _) in layers_rest]
    Dout = fc_w.shape[1]

    # One-time, tiny wrapper-side layout plumbing: time-major flatten so the
    # kernel can do the whole layer-0 input projection with a single matmul.
    x2d = jnp.transpose(x, (1, 0, 2)).reshape(S * B, E).astype(jnp.float32)

    operands = [x2d, w_ih0, w_hh0, b0]
    in_specs = [
        pl.BlockSpec(x2d.shape, lambda: (0, 0)),
        pl.BlockSpec(w_ih0.shape, lambda: (0, 0)),
        pl.BlockSpec(w_hh0.shape, lambda: (0, 0)),
        pl.BlockSpec(b0.shape, lambda: (0, 0)),
    ]
    for (w_ih, w_hh, b) in layers_rest:
        operands += [w_ih, w_hh, b]
        in_specs += [
            pl.BlockSpec(w_ih.shape, lambda: (0, 0)),
            pl.BlockSpec(w_hh.shape, lambda: (0, 0)),
            pl.BlockSpec(b.shape, lambda: (0, 0)),
        ]
    operands += [fc_w, fc_b]
    in_specs += [
        pl.BlockSpec(fc_w.shape, lambda: (0, 0)),
        pl.BlockSpec(fc_b.shape, lambda: (0, 0)),
    ]

    kernel = functools.partial(
        _fused_lstm_fc_kernel,
        n_layers=len(hidden_dims),
        hidden_dims=tuple(hidden_dims),
        seq_len=S,
        batch=B,
    )
    return pl.pallas_call(
        kernel,
        out_shape=jax.ShapeDtypeStruct((B, Dout), jnp.float32),
        in_specs=in_specs,
        out_specs=pl.BlockSpec((B, Dout), lambda: (0, 0)),
        compiler_params=pltpu.CompilerParams(
            vmem_limit_bytes=32 * 1024 * 1024),
    )(*operands)


# ---------------------------------------------------------------------------
# Parameter construction (xavier_uniform weights, zero biases — matching
# _initialize_weights with method='xavier_uniform', gain=1.0).
# ---------------------------------------------------------------------------
def _xavier_uniform(key, shape):
    fan_out, fan_in = shape[0], shape[1]
    limit = (6.0 / (fan_in + fan_out)) ** 0.5
    return jax.random.uniform(key, shape, jnp.float32, -limit, limit)


def make_params(key, embedding_dim, hidden_dims, output_dim):
    """Torch-layout params: W_ih (4H,in), W_hh (4H,H), gate order (i,f,g,o)."""
    params = {"lstm": []}
    in_size = embedding_dim
    for h in hidden_dims:
        key, k1, k2 = jax.random.split(key, 3)
        w_ih = _xavier_uniform(k1, (4 * h, in_size)).T       # -> (in, 4H)
        w_hh = _xavier_uniform(k2, (4 * h, h)).T              # -> (H, 4H)
        b = jnp.zeros((1, 4 * h), jnp.float32)                # b_ih + b_hh = 0
        params["lstm"].append((w_ih, w_hh, b))
        in_size = h
    key, kfc = jax.random.split(key)
    params["fc_w"] = _xavier_uniform(kfc, (output_dim, in_size)).T  # (H, Dout)
    params["fc_b"] = jnp.zeros((1, output_dim), jnp.float32)
    return params


def _permute_gates_ifog_to_ifog_last(w, h):
    """Permute gate columns from torch (i,f,g,o) to kernel order (i,f,o,g)."""
    i = w[..., 0 * h:1 * h]
    f = w[..., 1 * h:2 * h]
    g = w[..., 2 * h:3 * h]
    o = w[..., 3 * h:4 * h]
    return jnp.concatenate([i, f, o, g], axis=-1)


def prepare_kernel_params(params):
    """One-time layout plumbing: gate-column permutation to (i, f, o | g)."""
    lstm = []
    for (w_ih, w_hh, b) in params["lstm"]:
        h = w_hh.shape[0]
        lstm.append((
            _permute_gates_ifog_to_ifog_last(w_ih, h),
            _permute_gates_ifog_to_ifog_last(w_hh, h),
            _permute_gates_ifog_to_ifog_last(b, h),
        ))
    layer0 = lstm[0]
    layers_rest = lstm[1:]
    return layer0, layers_rest, params["fc_w"], params["fc_b"]


# ---------------------------------------------------------------------------
# BaseLSTM forward: one fused kernel call.
# ---------------------------------------------------------------------------
@jax.jit
def base_lstm_forward(x, layer0, layers_rest, fc_w, fc_b):
    # x: (B, S, E) batch-first; dropout / final_activation are Identity (eval).
    return fused_base_lstm_call(x.astype(jnp.float32), layer0, layers_rest,
                                fc_w, fc_b)


# ---------------------------------------------------------------------------
# Pure-JAX reference for sanity check (uses un-permuted torch-order weights).
# ---------------------------------------------------------------------------
def base_lstm_forward_ref(x, params_lstm, fc_w, fc_b):
    x_tm = jnp.transpose(x, (1, 0, 2)).astype(jnp.float32)
    h_seq = x_tm
    for (w_ih, w_hh, b) in params_lstm:
        H = w_hh.shape[0]
        B = x.shape[0]

        def step(carry, x_t):
            h, c = carry
            gates = x_t @ w_ih + h @ w_hh + b[0]
            i = jax.nn.sigmoid(gates[:, :H])
            f = jax.nn.sigmoid(gates[:, H:2 * H])
            g = jnp.tanh(gates[:, 2 * H:3 * H])
            o = jax.nn.sigmoid(gates[:, 3 * H:])
            c = f * c + i * g
            h = o * jnp.tanh(c)
            return (h, c), h

        init = (jnp.zeros((B, H)), jnp.zeros((B, H)))
        _, h_seq = jax.lax.scan(step, init, h_seq)
    return h_seq[-1] @ fc_w + fc_b[0]


if __name__ == "__main__":
    B, S, E = 2, 8, 32
    hidden_dims = [32, 32]
    output_dim = 4

    key = jax.random.PRNGKey(0)
    kx, kp = jax.random.split(key)
    x = jax.random.normal(kx, (B, S, E), jnp.float32)   # pre-embedded input

    params = make_params(kp, E, hidden_dims, output_dim)
    layer0, layers_rest, fc_w, fc_b = prepare_kernel_params(params)

    out = base_lstm_forward(x, layer0, layers_rest, fc_w, fc_b)
    out = jax.block_until_ready(out)

    ref = base_lstm_forward_ref(x, params["lstm"], params["fc_w"], params["fc_b"])
    assert out.shape == (B, output_dim)
    assert jnp.allclose(out, ref, atol=1e-4, rtol=1e-4), "mismatch vs reference"

    print("KERNEL_OK")
</pallas_src>

<mosaic_0001>
module attributes {stable_mosaic.version = 11 : i64} {
  func.func @_fused_lstm_fc_kernel(%arg0: memref<16x32xf32, #tpu.memory_space<vmem>>, %arg1: memref<32x128xf32, #tpu.memory_space<vmem>>, %arg2: memref<32x128xf32, #tpu.memory_space<vmem>>, %arg3: memref<1x128xf32, #tpu.memory_space<vmem>>, %arg4: memref<32x128xf32, #tpu.memory_space<vmem>>, %arg5: memref<32x128xf32, #tpu.memory_space<vmem>>, %arg6: memref<1x128xf32, #tpu.memory_space<vmem>>, %arg7: memref<32x4xf32, #tpu.memory_space<vmem>>, %arg8: memref<1x4xf32, #tpu.memory_space<vmem>>, %arg9: memref<2x4xf32, #tpu.memory_space<vmem>>) attributes {dimension_semantics = [], scalar_prefetch = 0 : i64, scratch_operands = 0 : i64, tpu.core_type = #tpu.core_type<tc>} {
    %c0 = arith.constant 0 : index
    %c0_0 = arith.constant 0 : index
    %0 = vector.load %arg0[%c0, %c0_0] : memref<16x32xf32, #tpu.memory_space<vmem>>, vector<16x32xf32>
    %c0_1 = arith.constant 0 : index
    %c0_2 = arith.constant 0 : index
    %1 = vector.load %arg1[%c0_1, %c0_2] : memref<32x128xf32, #tpu.memory_space<vmem>>, vector<32x128xf32>
    %cst = arith.constant dense<0.000000e+00> : vector<16x128xf32>
    %2 = tpu.matmul %0, %1, %cst {dimension_numbers = #tpu.dot_dimension_numbers<[1], [0], [0], [1], [0, 0, 1, 1], [], []>} : vector<16x32xf32>, vector<32x128xf32>, vector<16x128xf32> -> vector<16x128xf32>
    %c0_3 = arith.constant 0 : index
    %c0_4 = arith.constant 0 : index
    %3 = vector.load %arg3[%c0_3, %c0_4] : memref<1x128xf32, #tpu.memory_space<vmem>>, vector<1x128xf32>
    %4 = vector.broadcast %3 : vector<1x128xf32> to vector<16x128xf32>
    %5 = arith.addf %2, %4 : vector<16x128xf32>
    %c0_5 = arith.constant 0 : index
    %c0_6 = arith.constant 0 : index
    %6 = vector.load %arg2[%c0_5, %c0_6] : memref<32x128xf32, #tpu.memory_space<vmem>>, vector<32x128xf32>
    %c0_7 = arith.constant 0 : index
    %c0_8 = arith.constant 0 : index
    %7 = vector.load %arg6[%c0_7, %c0_8] : memref<1x128xf32, #tpu.memory_space<vmem>>, vector<1x128xf32>
    %8 = vector.shape_cast %7 : vector<1x128xf32> to vector<128xf32>
    %9 = vector.shape_cast %8 : vector<128xf32> to vector<1x128xf32>
    %10 = vector.broadcast %9 : vector<1x128xf32> to vector<2x128xf32>
    %c0_9 = arith.constant 0 : index
    %c0_10 = arith.constant 0 : index
    %11 = vector.load %arg4[%c0_9, %c0_10] : memref<32x128xf32, #tpu.memory_space<vmem>>, vector<32x128xf32>
    %c0_11 = arith.constant 0 : index
    %c0_12 = arith.constant 0 : index
    %12 = vector.load %arg5[%c0_11, %c0_12] : memref<32x128xf32, #tpu.memory_space<vmem>>, vector<32x128xf32>
    %cst_13 = arith.constant 0.000000e+00 : f32
    %13 = vector.broadcast %cst_13 : f32 to vector<2x32xf32>
    %cst_14 = arith.constant 0.000000e+00 : f32
    %14 = vector.broadcast %cst_14 : f32 to vector<2x32xf32>
    %cst_15 = arith.constant 0.000000e+00 : f32
    %15 = vector.broadcast %cst_15 : f32 to vector<2x32xf32>
    %cst_16 = arith.constant 0.000000e+00 : f32
    %16 = vector.broadcast %cst_16 : f32 to vector<2x32xf32>
    %17 = vector.extract_strided_slice %5 {offsets = [0, 0], sizes = [2, 128], strides = [1, 1]} : vector<16x128xf32> to vector<2x128xf32>
    %cst_17 = arith.constant dense<0.000000e+00> : vector<2x128xf32>
    %18 = tpu.matmul %13, %6, %cst_17 {dimension_numbers = #tpu.dot_dimension_numbers<[1], [0], [0], [1], [0, 0, 1, 1], [], []>} : vector<2x32xf32>, vector<32x128xf32>, vector<2x128xf32> -> vector<2x128xf32>
    %19 = arith.addf %17, %18 : vector<2x128xf32>
    %20 = vector.extract_strided_slice %19 {offsets = [0, 0], sizes = [2, 96], strides = [1, 1]} : vector<2x128xf32> to vector<2x96xf32>
    %21 = arith.negf %20 : vector<2x96xf32>
    %22 = math.exp %21 : vector<2x96xf32>
    %cst_18 = arith.constant 1.000000e+00 : f32
    %23 = vector.broadcast %cst_18 : f32 to vector<2x96xf32>
    %24 = arith.addf %23, %22 : vector<2x96xf32>
    %25 = arith.divf %23, %24 : vector<2x96xf32>
    %26 = vector.extract_strided_slice %25 {offsets = [0, 0], sizes = [2, 32], strides = [1, 1]} : vector<2x96xf32> to vector<2x32xf32>
    %27 = vector.extract_strided_slice %25 {offsets = [0, 32], sizes = [2, 32], strides = [1, 1]} : vector<2x96xf32> to vector<2x32xf32>
    %28 = vector.extract_strided_slice %25 {offsets = [0, 64], sizes = [2, 32], strides = [1, 1]} : vector<2x96xf32> to vector<2x32xf32>
    %29 = vector.extract_strided_slice %19 {offsets = [0, 96], sizes = [2, 32], strides = [1, 1]} : vector<2x128xf32> to vector<2x32xf32>
    %30 = math.tanh %29 : vector<2x32xf32>
    %31 = arith.mulf %27, %15 : vector<2x32xf32>
    %32 = arith.mulf %26, %30 : vector<2x32xf32>
    %33 = arith.addf %31, %32 : vector<2x32xf32>
    %34 = math.tanh %33 : vector<2x32xf32>
    %35 = arith.mulf %28, %34 : vector<2x32xf32>
    %cst_19 = arith.constant dense<0.000000e+00> : vector<2x128xf32>
    %36 = tpu.matmul %35, %11, %cst_19 {dimension_numbers = #tpu.dot_dimension_numbers<[1], [0], [0], [1], [0, 0, 1, 1], [], []>} : vector<2x32xf32>, vector<32x128xf32>, vector<2x128xf32> -> vector<2x128xf32>
    %cst_20 = arith.constant dense<0.000000e+00> : vector<2x128xf32>
    %37 = tpu.matmul %14, %12, %cst_20 {dimension_numbers = #tpu.dot_dimension_numbers<[1], [0], [0], [1], [0, 0, 1, 1], [], []>} : vector<2x32xf32>, vector<32x128xf32>, vector<2x128xf32> -> vector<2x128xf32>
    %38 = arith.addf %36, %37 : vector<2x128xf32>
    %39 = arith.addf %38, %10 : vector<2x128xf32>
    %40 = vector.extract_strided_slice %39 {offsets = [0, 0], sizes = [2, 96], strides = [1, 1]} : vector<2x128xf32> to vector<2x96xf32>
    %41 = arith.negf %40 : vector<2x96xf32>
    %42 = math.exp %41 : vector<2x96xf32>
    %cst_21 = arith.constant 1.000000e+00 : f32
    %43 = vector.broadcast %cst_21 : f32 to vector<2x96xf32>
    %44 = arith.addf %43, %42 : vector<2x96xf32>
    %45 = arith.divf %43, %44 : vector<2x96xf32>
    %46 = vector.extract_strided_slice %45 {offsets = [0, 0], sizes = [2, 32], strides = [1, 1]} : vector<2x96xf32> to vector<2x32xf32>
    %47 = vector.extract_strided_slice %45 {offsets = [0, 32], sizes = [2, 32], strides = [1, 1]} : vector<2x96xf32> to vector<2x32xf32>
    %48 = vector.extract_strided_slice %45 {offsets = [0, 64], sizes = [2, 32], strides = [1, 1]} : vector<2x96xf32> to vector<2x32xf32>
    %49 = vector.extract_strided_slice %39 {offsets = [0, 96], sizes = [2, 32], strides = [1, 1]} : vector<2x128xf32> to vector<2x32xf32>
    %50 = math.tanh %49 : vector<2x32xf32>
    %51 = arith.mulf %47, %16 : vector<2x32xf32>
    %52 = arith.mulf %46, %50 : vector<2x32xf32>
    %53 = arith.addf %51, %52 : vector<2x32xf32>
    %54 = math.tanh %53 : vector<2x32xf32>
    %55 = arith.mulf %48, %54 : vector<2x32xf32>
    %56 = vector.extract_strided_slice %5 {offsets = [2, 0], sizes = [2, 128], strides = [1, 1]} : vector<16x128xf32> to vector<2x128xf32>
    %cst_22 = arith.constant dense<0.000000e+00> : vector<2x128xf32>
    %57 = tpu.matmul %35, %6, %cst_22 {dimension_numbers = #tpu.dot_dimension_numbers<[1], [0], [0], [1], [0, 0, 1, 1], [], []>} : vector<2x32xf32>, vector<32x128xf32>, vector<2x128xf32> -> vector<2x128xf32>
    %58 = arith.addf %56, %57 : vector<2x128xf32>
    %59 = vector.extract_strided_slice %58 {offsets = [0, 0], sizes = [2, 96], strides = [1, 1]} : vector<2x128xf32> to vector<2x96xf32>
    %60 = arith.negf %59 : vector<2x96xf32>
    %61 = math.exp %60 : vector<2x96xf32>
    %cst_23 = arith.constant 1.000000e+00 : f32
    %62 = vector.broadcast %cst_23 : f32 to vector<2x96xf32>
    %63 = arith.addf %62, %61 : vector<2x96xf32>
    %64 = arith.divf %62, %63 : vector<2x96xf32>
    %65 = vector.extract_strided_slice %64 {offsets = [0, 0], sizes = [2, 32], strides = [1, 1]} : vector<2x96xf32> to vector<2x32xf32>
    %66 = vector.extract_strided_slice %64 {offsets = [0, 32], sizes = [2, 32], strides = [1, 1]} : vector<2x96xf32> to vector<2x32xf32>
    %67 = vector.extract_strided_slice %64 {offsets = [0, 64], sizes = [2, 32], strides = [1, 1]} : vector<2x96xf32> to vector<2x32xf32>
    %68 = vector.extract_strided_slice %58 {offsets = [0, 96], sizes = [2, 32], strides = [1, 1]} : vector<2x128xf32> to vector<2x32xf32>
    %69 = math.tanh %68 : vector<2x32xf32>
    %70 = arith.mulf %66, %33 : vector<2x32xf32>
    %71 = arith.mulf %65, %69 : vector<2x32xf32>
    %72 = arith.addf %70, %71 : vector<2x32xf32>
    %73 = math.tanh %72 : vector<2x32xf32>
    %74 = arith.mulf %67, %73 : vector<2x32xf32>
    %cst_24 = arith.constant dense<0.000000e+00> : vector<2x128xf32>
    %75 = tpu.matmul %74, %11, %cst_24 {dimension_numbers = #tpu.dot_dimension_numbers<[1], [0], [0], [1], [0, 0, 1, 1], [], []>} : vector<2x32xf32>, vector<32x128xf32>, vector<2x128xf32> -> vector<2x128xf32>
    %cst_25 = arith.constant dense<0.000000e+00> : vector<2x128xf32>
    %76 = tpu.matmul %55, %12, %cst_25 {dimension_numbers = #tpu.dot_dimension_numbers<[1], [0], [0], [1], [0, 0, 1, 1], [], []>} : vector<2x32xf32>, vector<32x128xf32>, vector<2x128xf32> -> vector<2x128xf32>
    %77 = arith.addf %75, %76 : vector<2x128xf32>
    %78 = arith.addf %77, %10 : vector<2x128xf32>
    %79 = vector.extract_strided_slice %78 {offsets = [0, 0], sizes = [2, 96], strides = [1, 1]} : vector<2x128xf32> to vector<2x96xf32>
    %80 = arith.negf %79 : vector<2x96xf32>
    %81 = math.exp %80 : vector<2x96xf32>
    %cst_26 = arith.constant 1.000000e+00 : f32
    %82 = vector.broadcast %cst_26 : f32 to vector<2x96xf32>
    %83 = arith.addf %82, %81 : vector<2x96xf32>
    %84 = arith.divf %82, %83 : vector<2x96xf32>
    %85 = vector.extract_strided_slice %84 {offsets = [0, 0], sizes = [2, 32], strides = [1, 1]} : vector<2x96xf32> to vector<2x32xf32>
    %86 = vector.extract_strided_slice %84 {offsets = [0, 32], sizes = [2, 32], strides = [1, 1]} : vector<2x96xf32> to vector<2x32xf32>
    %87 = vector.extract_strided_slice %84 {offsets = [0, 64], sizes = [2, 32], strides = [1, 1]} : vector<2x96xf32> to vector<2x32xf32>
    %88 = vector.extract_strided_slice %78 {offsets = [0, 96], sizes = [2, 32], strides = [1, 1]} : vector<2x128xf32> to vector<2x32xf32>
    %89 = math.tanh %88 : vector<2x32xf32>
    %90 = arith.mulf %86, %53 : vector<2x32xf32>
    %91 = arith.mulf %85, %89 : vector<2x32xf32>
    %92 = arith.addf %90, %91 : vector<2x32xf32>
    %93 = math.tanh %92 : vector<2x32xf32>
    %94 = arith.mulf %87, %93 : vector<2x32xf32>
    %95 = vector.extract_strided_slice %5 {offsets = [4, 0], sizes = [2, 128], strides = [1, 1]} : vector<16x128xf32> to vector<2x128xf32>
    %cst_27 = arith.constant dense<0.000000e+00> : vector<2x128xf32>
    %96 = tpu.matmul %74, %6, %cst_27 {dimension_numbers = #tpu.dot_dimension_numbers<[1], [0], [0], [1], [0, 0, 1, 1], [], []>} : vector<2x32xf32>, vector<32x128xf32>, vector<2x128xf32> -> vector<2x128xf32>
    %97 = arith.addf %95, %96 : vector<2x128xf32>
    %98 = vector.extract_strided_slice %97 {offsets = [0, 0], sizes = [2, 96], strides = [1, 1]} : vector<2x128xf32> to vector<2x96xf32>
    %99 = arith.negf %98 : vector<2x96xf32>
    %100 = math.exp %99 : vector<2x96xf32>
    %cst_28 = arith.constant 1.000000e+00 : f32
    %101 = vector.broadcast %cst_28 : f32 to vector<2x96xf32>
    %102 = arith.addf %101, %100 : vector<2x96xf32>
    %103 = arith.divf %101, %102 : vector<2x96xf32>
    %104 = vector.extract_strided_slice %103 {offsets = [0, 0], sizes = [2, 32], strides = [1, 1]} : vector<2x96xf32> to vector<2x32xf32>
    %105 = vector.extract_strided_slice %103 {offsets = [0, 32], sizes = [2, 32], strides = [1, 1]} : vector<2x96xf32> to vector<2x32xf32>
    %106 = vector.extract_strided_slice %103 {offsets = [0, 64], sizes = [2, 32], strides = [1, 1]} : vector<2x96xf32> to vector<2x32xf32>
    %107 = vector.extract_strided_slice %97 {offsets = [0, 96], sizes = [2, 32], strides = [1, 1]} : vector<2x128xf32> to vector<2x32xf32>
    %108 = math.tanh %107 : vector<2x32xf32>
    %109 = arith.mulf %105, %72 : vector<2x32xf32>
    %110 = arith.mulf %104, %108 : vector<2x32xf32>
    %111 = arith.addf %109, %110 : vector<2x32xf32>
    %112 = math.tanh %111 : vector<2x32xf32>
    %113 = arith.mulf %106, %112 : vector<2x32xf32>
    %cst_29 = arith.constant dense<0.000000e+00> : vector<2x128xf32>
    %114 = tpu.matmul %113, %11, %cst_29 {dimension_numbers = #tpu.dot_dimension_numbers<[1], [0], [0], [1], [0, 0, 1, 1], [], []>} : vector<2x32xf32>, vector<32x128xf32>, vector<2x128xf32> -> vector<2x128xf32>
    %cst_30 = arith.constant dense<0.000000e+00> : vector<2x128xf32>
    %115 = tpu.matmul %94, %12, %cst_30 {dimension_numbers = #tpu.dot_dimension_numbers<[1], [0], [0], [1], [0, 0, 1, 1], [], []>} : vector<2x32xf32>, vector<32x128xf32>, vector<2x128xf32> -> vector<2x128xf32>
    %116 = arith.addf %114, %115 : vector<2x128xf32>
    %117 = arith.addf %116, %10 : vector<2x128xf32>
    %118 = vector.extract_strided_slice %117 {offsets = [0, 0], sizes = [2, 96], strides = [1, 1]} : vector<2x128xf32> to vector<2x96xf32>
    %119 = arith.negf %118 : vector<2x96xf32>
    %120 = math.exp %119 : vector<2x96xf32>
    %cst_31 = arith.constant 1.000000e+00 : f32
    %121 = vector.broadcast %cst_31 : f32 to vector<2x96xf32>
    %122 = arith.addf %121, %120 : vector<2x96xf32>
    %123 = arith.divf %121, %122 : vector<2x96xf32>
    %124 = vector.extract_strided_slice %123 {offsets = [0, 0], sizes = [2, 32], strides = [1, 1]} : vector<2x96xf32> to vector<2x32xf32>
    %125 = vector.extract_strided_slice %123 {offsets = [0, 32], sizes = [2, 32], strides = [1, 1]} : vector<2x96xf32> to vector<2x32xf32>
    %126 = vector.extract_strided_slice %123 {offsets = [0, 64], sizes = [2, 32], strides = [1, 1]} : vector<2x96xf32> to vector<2x32xf32>
    %127 = vector.extract_strided_slice %117 {offsets = [0, 96], sizes = [2, 32], strides = [1, 1]} : vector<2x128xf32> to vector<2x32xf32>
    %128 = math.tanh %127 : vector<2x32xf32>
    %129 = arith.mulf %125, %92 : vector<2x32xf32>
    %130 = arith.mulf %124, %128 : vector<2x32xf32>
    %131 = arith.addf %129, %130 : vector<2x32xf32>
    %132 = math.tanh %131 : vector<2x32xf32>
    %133 = arith.mulf %126, %132 : vector<2x32xf32>
    %134 = vector.extract_strided_slice %5 {offsets = [6, 0], sizes = [2, 128], strides = [1, 1]} : vector<16x128xf32> to vector<2x128xf32>
    %cst_32 = arith.constant dense<0.000000e+00> : vector<2x128xf32>
    %135 = tpu.matmul %113, %6, %cst_32 {dimension_numbers = #tpu.dot_dimension_numbers<[1], [0], [0], [1], [0, 0, 1, 1], [], []>} : vector<2x32xf32>, vector<32x128xf32>, vector<2x128xf32> -> vector<2x128xf32>
    %136 = arith.addf %134, %135 : vector<2x128xf32>
    %137 = vector.extract_strided_slice %136 {offsets = [0, 0], sizes = [2, 96], strides = [1, 1]} : vector<2x128xf32> to vector<2x96xf32>
    %138 = arith.negf %137 : vector<2x96xf32>
    %139 = math.exp %138 : vector<2x96xf32>
    %cst_33 = arith.constant 1.000000e+00 : f32
    %140 = vector.broadcast %cst_33 : f32 to vector<2x96xf32>
    %141 = arith.addf %140, %139 : vector<2x96xf32>
    %142 = arith.divf %140, %141 : vector<2x96xf32>
    %143 = vector.extract_strided_slice %142 {offsets = [0, 0], sizes = [2, 32], strides = [1, 1]} : vector<2x96xf32> to vector<2x32xf32>
    %144 = vector.extract_strided_slice %142 {offsets = [0, 32], sizes = [2, 32], strides = [1, 1]} : vector<2x96xf32> to vector<2x32xf32>
    %145 = vector.extract_strided_slice %142 {offsets = [0, 64], sizes = [2, 32], strides = [1, 1]} : vector<2x96xf32> to vector<2x32xf32>
    %146 = vector.extract_strided_slice %136 {offsets = [0, 96], sizes = [2, 32], strides = [1, 1]} : vector<2x128xf32> to vector<2x32xf32>
    %147 = math.tanh %146 : vector<2x32xf32>
    %148 = arith.mulf %144, %111 : vector<2x32xf32>
    %149 = arith.mulf %143, %147 : vector<2x32xf32>
    %150 = arith.addf %148, %149 : vector<2x32xf32>
    %151 = math.tanh %150 : vector<2x32xf32>
    %152 = arith.mulf %145, %151 : vector<2x32xf32>
    %cst_34 = arith.constant dense<0.000000e+00> : vector<2x128xf32>
    %153 = tpu.matmul %152, %11, %cst_34 {dimension_numbers = #tpu.dot_dimension_numbers<[1], [0], [0], [1], [0, 0, 1, 1], [], []>} : vector<2x32xf32>, vector<32x128xf32>, vector<2x128xf32> -> vector<2x128xf32>
    %cst_35 = arith.constant dense<0.000000e+00> : vector<2x128xf32>
    %154 = tpu.matmul %133, %12, %cst_35 {dimension_numbers = #tpu.dot_dimension_numbers<[1], [0], [0], [1], [0, 0, 1, 1], [], []>} : vector<2x32xf32>, vector<32x128xf32>, vector<2x128xf32> -> vector<2x128xf32>
    %155 = arith.addf %153, %154 : vector<2x128xf32>
    %156 = arith.addf %155, %10 : vector<2x128xf32>
    %157 = vector.extract_strided_slice %156 {offsets = [0, 0], sizes = [2, 96], strides = [1, 1]} : vector<2x128xf32> to vector<2x96xf32>
    %158 = arith.negf %157 : vector<2x96xf32>
    %159 = math.exp %158 : vector<2x96xf32>
    %cst_36 = arith.constant 1.000000e+00 : f32
    %160 = vector.broadcast %cst_36 : f32 to vector<2x96xf32>
    %161 = arith.addf %160, %159 : vector<2x96xf32>
    %162 = arith.divf %160, %161 : vector<2x96xf32>
    %163 = vector.extract_strided_slice %162 {offsets = [0, 0], sizes = [2, 32], strides = [1, 1]} : vector<2x96xf32> to vector<2x32xf32>
    %164 = vector.extract_strided_slice %162 {offsets = [0, 32], sizes = [2, 32], strides = [1, 1]} : vector<2x96xf32> to vector<2x32xf32>
    %165 = vector.extract_strided_slice %162 {offsets = [0, 64], sizes = [2, 32], strides = [1, 1]} : vector<2x96xf32> to vector<2x32xf32>
    %166 = vector.extract_strided_slice %156 {offsets = [0, 96], sizes = [2, 32], strides = [1, 1]} : vector<2x128xf32> to vector<2x32xf32>
    %167 = math.tanh %166 : vector<2x32xf32>
    %168 = arith.mulf %164, %131 : vector<2x32xf32>
    %169 = arith.mulf %163, %167 : vector<2x32xf32>
    %170 = arith.addf %168, %169 : vector<2x32xf32>
    %171 = math.tanh %170 : vector<2x32xf32>
    %172 = arith.mulf %165, %171 : vector<2x32xf32>
    %173 = vector.extract_strided_slice %5 {offsets = [8, 0], sizes = [2, 128], strides = [1, 1]} : vector<16x128xf32> to vector<2x128xf32>
    %cst_37 = arith.constant dense<0.000000e+00> : vector<2x128xf32>
    %174 = tpu.matmul %152, %6, %cst_37 {dimension_numbers = #tpu.dot_dimension_numbers<[1], [0], [0], [1], [0, 0, 1, 1], [], []>} : vector<2x32xf32>, vector<32x128xf32>, vector<2x128xf32> -> vector<2x128xf32>
    %175 = arith.addf %173, %174 : vector<2x128xf32>
    %176 = vector.extract_strided_slice %175 {offsets = [0, 0], sizes = [2, 96], strides = [1, 1]} : vector<2x128xf32> to vector<2x96xf32>
    %177 = arith.negf %176 : vector<2x96xf32>
    %178 = math.exp %177 : vector<2x96xf32>
    %cst_38 = arith.constant 1.000000e+00 : f32
    %179 = vector.broadcast %cst_38 : f32 to vector<2x96xf32>
    %180 = arith.addf %179, %178 : vector<2x96xf32>
    %181 = arith.divf %179, %180 : vector<2x96xf32>
    %182 = vector.extract_strided_slice %181 {offsets = [0, 0], sizes = [2, 32], strides = [1, 1]} : vector<2x96xf32> to vector<2x32xf32>
    %183 = vector.extract_strided_slice %181 {offsets = [0, 32], sizes = [2, 32], strides = [1, 1]} : vector<2x96xf32> to vector<2x32xf32>
    %184 = vector.extract_strided_slice %181 {offsets = [0, 64], sizes = [2, 32], strides = [1, 1]} : vector<2x96xf32> to vector<2x32xf32>
    %185 = vector.extract_strided_slice %175 {offsets = [0, 96], sizes = [2, 32], strides = [1, 1]} : vector<2x128xf32> to vector<2x32xf32>
    %186 = math.tanh %185 : vector<2x32xf32>
    %187 = arith.mulf %183, %150 : vector<2x32xf32>
    %188 = arith.mulf %182, %186 : vector<2x32xf32>
    %189 = arith.addf %187, %188 : vector<2x32xf32>
    %190 = math.tanh %189 : vector<2x32xf32>
    %191 = arith.mulf %184, %190 : vector<2x32xf32>
    %cst_39 = arith.constant dense<0.000000e+00> : vector<2x128xf32>
    %192 = tpu.matmul %191, %11, %cst_39 {dimension_numbers = #tpu.dot_dimension_numbers<[1], [0], [0], [1], [0, 0, 1, 1], [], []>} : vector<2x32xf32>, vector<32x128xf32>, vector<2x128xf32> -> vector<2x128xf32>
    %cst_40 = arith.constant dense<0.000000e+00> : vector<2x128xf32>
    %193 = tpu.matmul %172, %12, %cst_40 {dimension_numbers = #tpu.dot_dimension_numbers<[1], [0], [0], [1], [0, 0, 1, 1], [], []>} : vector<2x32xf32>, vector<32x128xf32>, vector<2x128xf32> -> vector<2x128xf32>
    %194 = arith.addf %192, %193 : vector<2x128xf32>
    %195 = arith.addf %194, %10 : vector<2x128xf32>
    %196 = vector.extract_strided_slice %195 {offsets = [0, 0], sizes = [2, 96], strides = [1, 1]} : vector<2x128xf32> to vector<2x96xf32>
    %197 = arith.negf %196 : vector<2x96xf32>
    %198 = math.exp %197 : vector<2x96xf32>
    %cst_41 = arith.constant 1.000000e+00 : f32
    %199 = vector.broadcast %cst_41 : f32 to vector<2x96xf32>
    %200 = arith.addf %199, %198 : vector<2x96xf32>
    %201 = arith.divf %199, %200 : vector<2x96xf32>
    %202 = vector.extract_strided_slice %201 {offsets = [0, 0], sizes = [2, 32], strides = [1, 1]} : vector<2x96xf32> to vector<2x32xf32>
    %203 = vector.extract_strided_slice %201 {offsets = [0, 32], sizes = [2, 32], strides = [1, 1]} : vector<2x96xf32> to vector<2x32xf32>
    %204 = vector.extract_strided_slice %201 {offsets = [0, 64], sizes = [2, 32], strides = [1, 1]} : vector<2x96xf32> to vector<2x32xf32>
    %205 = vector.extract_strided_slice %195 {offsets = [0, 96], sizes = [2, 32], strides = [1, 1]} : vector<2x128xf32> to vector<2x32xf32>
    %206 = math.tanh %205 : vector<2x32xf32>
    %207 = arith.mulf %203, %170 : vector<2x32xf32>
    %208 = arith.mulf %202, %206 : vector<2x32xf32>
    %209 = arith.addf %207, %208 : vector<2x32xf32>
    %210 = math.tanh %209 : vector<2x32xf32>
    %211 = arith.mulf %204, %210 : vector<2x32xf32>
    %212 = vector.extract_strided_slice %5 {offsets = [10, 0], sizes = [2, 128], strides = [1, 1]} : vector<16x128xf32> to vector<2x128xf32>
    %cst_42 = arith.constant dense<0.000000e+00> : vector<2x128xf32>
    %213 = tpu.matmul %191, %6, %cst_42 {dimension_numbers = #tpu.dot_dimension_numbers<[1], [0], [0], [1], [0, 0, 1, 1], [], []>} : vector<2x32xf32>, vector<32x128xf32>, vector<2x128xf32> -> vector<2x128xf32>
    %214 = arith.addf %212, %213 : vector<2x128xf32>
    %215 = vector.extract_strided_slice %214 {offsets = [0, 0], sizes = [2, 96], strides = [1, 1]} : vector<2x128xf32> to vector<2x96xf32>
    %216 = arith.negf %215 : vector<2x96xf32>
    %217 = math.exp %216 : vector<2x96xf32>
    %cst_43 = arith.constant 1.000000e+00 : f32
    %218 = vector.broadcast %cst_43 : f32 to vector<2x96xf32>
    %219 = arith.addf %218, %217 : vector<2x96xf32>
    %220 = arith.divf %218, %219 : vector<2x96xf32>
    %221 = vector.extract_strided_slice %220 {offsets = [0, 0], sizes = [2, 32], strides = [1, 1]} : vector<2x96xf32> to vector<2x32xf32>
    %222 = vector.extract_strided_slice %220 {offsets = [0, 32], sizes = [2, 32], strides = [1, 1]} : vector<2x96xf32> to vector<2x32xf32>
    %223 = vector.extract_strided_slice %220 {offsets = [0, 64], sizes = [2, 32], strides = [1, 1]} : vector<2x96xf32> to vector<2x32xf32>
    %224 = vector.extract_strided_slice %214 {offsets = [0, 96], sizes = [2, 32], strides = [1, 1]} : vector<2x128xf32> to vector<2x32xf32>
    %225 = math.tanh %224 : vector<2x32xf32>
    %226 = arith.mulf %222, %189 : vector<2x32xf32>
    %227 = arith.mulf %221, %225 : vector<2x32xf32>
    %228 = arith.addf %226, %227 : vector<2x32xf32>
    %229 = math.tanh %228 : vector<2x32xf32>
    %230 = arith.mulf %223, %229 : vector<2x32xf32>
    %cst_44 = arith.constant dense<0.000000e+00> : vector<2x128xf32>
    %231 = tpu.matmul %230, %11, %cst_44 {dimension_numbers = #tpu.dot_dimension_numbers<[1], [0], [0], [1], [0, 0, 1, 1], [], []>} : vector<2x32xf32>, vector<32x128xf32>, vector<2x128xf32> -> vector<2x128xf32>
    %cst_45 = arith.constant dense<0.000000e+00> : vector<2x128xf32>
    %232 = tpu.matmul %211, %12, %cst_45 {dimension_numbers = #tpu.dot_dimension_numbers<[1], [0], [0], [1], [0, 0, 1, 1], [], []>} : vector<2x32xf32>, vector<32x128xf32>, vector<2x128xf32> -> vector<2x128xf32>
    %233 = arith.addf %231, %232 : vector<2x128xf32>
    %234 = arith.addf %233, %10 : vector<2x128xf32>
    %235 = vector.extract_strided_slice %234 {offsets = [0, 0], sizes = [2, 96], strides = [1, 1]} : vector<2x128xf32> to vector<2x96xf32>
    %236 = arith.negf %235 : vector<2x96xf32>
    %237 = math.exp %236 : vector<2x96xf32>
    %cst_46 = arith.constant 1.000000e+00 : f32
    %238 = vector.broadcast %cst_46 : f32 to vector<2x96xf32>
    %239 = arith.addf %238, %237 : vector<2x96xf32>
    %240 = arith.divf %238, %239 : vector<2x96xf32>
    %241 = vector.extract_strided_slice %240 {offsets = [0, 0], sizes = [2, 32], strides = [1, 1]} : vector<2x96xf32> to vector<2x32xf32>
    %242 = vector.extract_strided_slice %240 {offsets = [0, 32], sizes = [2, 32], strides = [1, 1]} : vector<2x96xf32> to vector<2x32xf32>
    %243 = vector.extract_strided_slice %240 {offsets = [0, 64], sizes = [2, 32], strides = [1, 1]} : vector<2x96xf32> to vector<2x32xf32>
    %244 = vector.extract_strided_slice %234 {offsets = [0, 96], sizes = [2, 32], strides = [1, 1]} : vector<2x128xf32> to vector<2x32xf32>
    %245 = math.tanh %244 : vector<2x32xf32>
    %246 = arith.mulf %242, %209 : vector<2x32xf32>
    %247 = arith.mulf %241, %245 : vector<2x32xf32>
    %248 = arith.addf %246, %247 : vector<2x32xf32>
    %249 = math.tanh %248 : vector<2x32xf32>
    %250 = arith.mulf %243, %249 : vector<2x32xf32>
    %251 = vector.extract_strided_slice %5 {offsets = [12, 0], sizes = [2, 128], strides = [1, 1]} : vector<16x128xf32> to vector<2x128xf32>
    %cst_47 = arith.constant dense<0.000000e+00> : vector<2x128xf32>
    %252 = tpu.matmul %230, %6, %cst_47 {dimension_numbers = #tpu.dot_dimension_numbers<[1], [0], [0], [1], [0, 0, 1, 1], [], []>} : vector<2x32xf32>, vector<32x128xf32>, vector<2x128xf32> -> vector<2x128xf32>
    %253 = arith.addf %251, %252 : vector<2x128xf32>
    %254 = vector.extract_strided_slice %253 {offsets = [0, 0], sizes = [2, 96], strides = [1, 1]} : vector<2x128xf32> to vector<2x96xf32>
    %255 = arith.negf %254 : vector<2x96xf32>
    %256 = math.exp %255 : vector<2x96xf32>
    %cst_48 = arith.constant 1.000000e+00 : f32
    %257 = vector.broadcast %cst_48 : f32 to vector<2x96xf32>
    %258 = arith.addf %257, %256 : vector<2x96xf32>
    %259 = arith.divf %257, %258 : vector<2x96xf32>
    %260 = vector.extract_strided_slice %259 {offsets = [0, 0], sizes = [2, 32], strides = [1, 1]} : vector<2x96xf32> to vector<2x32xf32>
    %261 = vector.extract_strided_slice %259 {offsets = [0, 32], sizes = [2, 32], strides = [1, 1]} : vector<2x96xf32> to vector<2x32xf32>
    %262 = vector.extract_strided_slice %259 {offsets = [0, 64], sizes = [2, 32], strides = [1, 1]} : vector<2x96xf32> to vector<2x32xf32>
    %263 = vector.extract_strided_slice %253 {offsets = [0, 96], sizes = [2, 32], strides = [1, 1]} : vector<2x128xf32> to vector<2x32xf32>
    %264 = math.tanh %263 : vector<2x32xf32>
    %265 = arith.mulf %261, %228 : vector<2x32xf32>
    %266 = arith.mulf %260, %264 : vector<2x32xf32>
    %267 = arith.addf %265, %266 : vector<2x32xf32>
    %268 = math.tanh %267 : vector<2x32xf32>
    %269 = arith.mulf %262, %268 : vector<2x32xf32>
    %cst_49 = arith.constant dense<0.000000e+00> : vector<2x128xf32>
    %270 = tpu.matmul %269, %11, %cst_49 {dimension_numbers = #tpu.dot_dimension_numbers<[1], [0], [0], [1], [0, 0, 1, 1], [], []>} : vector<2x32xf32>, vector<32x128xf32>, vector<2x128xf32> -> vector<2x128xf32>
    %cst_50 = arith.constant dense<0.000000e+00> : vector<2x128xf32>
    %271 = tpu.matmul %250, %12, %cst_50 {dimension_numbers = #tpu.dot_dimension_numbers<[1], [0], [0], [1], [0, 0, 1, 1], [], []>} : vector<2x32xf32>, vector<32x128xf32>, vector<2x128xf32> -> vector<2x128xf32>
    %272 = arith.addf %270, %271 : vector<2x128xf32>
    %273 = arith.addf %272, %10 : vector<2x128xf32>
    %274 = vector.extract_strided_slice %273 {offsets = [0, 0], sizes = [2, 96], strides = [1, 1]} : vector<2x128xf32> to vector<2x96xf32>
    %275 = arith.negf %274 : vector<2x96xf32>
    %276 = math.exp %275 : vector<2x96xf32>
    %cst_51 = arith.constant 1.000000e+00 : f32
    %277 = vector.broadcast %cst_51 : f32 to vector<2x96xf32>
    %278 = arith.addf %277, %276 : vector<2x96xf32>
    %279 = arith.divf %277, %278 : vector<2x96xf32>
    %280 = vector.extract_strided_slice %279 {offsets = [0, 0], sizes = [2, 32], strides = [1, 1]} : vector<2x96xf32> to vector<2x32xf32>
    %281 = vector.extract_strided_slice %279 {offsets = [0, 32], sizes = [2, 32], strides = [1, 1]} : vector<2x96xf32> to vector<2x32xf32>
    %282 = vector.extract_strided_slice %279 {offsets = [0, 64], sizes = [2, 32], strides = [1, 1]} : vector<2x96xf32> to vector<2x32xf32>
    %283 = vector.extract_strided_slice %273 {offsets = [0, 96], sizes = [2, 32], strides = [1, 1]} : vector<2x128xf32> to vector<2x32xf32>
    %284 = math.tanh %283 : vector<2x32xf32>
    %285 = arith.mulf %281, %248 : vector<2x32xf32>
    %286 = arith.mulf %280, %284 : vector<2x32xf32>
    %287 = arith.addf %285, %286 : vector<2x32xf32>
    %288 = math.tanh %287 : vector<2x32xf32>
    %289 = arith.mulf %282, %288 : vector<2x32xf32>
    %290 = vector.extract_strided_slice %5 {offsets = [14, 0], sizes = [2, 128], strides = [1, 1]} : vector<16x128xf32> to vector<2x128xf32>
    %cst_52 = arith.constant dense<0.000000e+00> : vector<2x128xf32>
    %291 = tpu.matmul %269, %6, %cst_52 {dimension_numbers = #tpu.dot_dimension_numbers<[1], [0], [0], [1], [0, 0, 1, 1], [], []>} : vector<2x32xf32>, vector<32x128xf32>, vector<2x128xf32> -> vector<2x128xf32>
    %292 = arith.addf %290, %291 : vector<2x128xf32>
    %293 = vector.extract_strided_slice %292 {offsets = [0, 0], sizes = [2, 96], strides = [1, 1]} : vector<2x128xf32> to vector<2x96xf32>
    %294 = arith.negf %293 : vector<2x96xf32>
    %295 = math.exp %294 : vector<2x96xf32>
    %cst_53 = arith.constant 1.000000e+00 : f32
    %296 = vector.broadcast %cst_53 : f32 to vector<2x96xf32>
    %297 = arith.addf %296, %295 : vector<2x96xf32>
    %298 = arith.divf %296, %297 : vector<2x96xf32>
    %299 = vector.extract_strided_slice %298 {offsets = [0, 0], sizes = [2, 32], strides = [1, 1]} : vector<2x96xf32> to vector<2x32xf32>
    %300 = vector.extract_strided_slice %298 {offsets = [0, 32], sizes = [2, 32], strides = [1, 1]} : vector<2x96xf32> to vector<2x32xf32>
    %301 = vector.extract_strided_slice %298 {offsets = [0, 64], sizes = [2, 32], strides = [1, 1]} : vector<2x96xf32> to vector<2x32xf32>
    %302 = vector.extract_strided_slice %292 {offsets = [0, 96], sizes = [2, 32], strides = [1, 1]} : vector<2x128xf32> to vector<2x32xf32>
    %303 = math.tanh %302 : vector<2x32xf32>
    %304 = arith.mulf %300, %267 : vector<2x32xf32>
    %305 = arith.mulf %299, %303 : vector<2x32xf32>
    %306 = arith.addf %304, %305 : vector<2x32xf32>
    %307 = math.tanh %306 : vector<2x32xf32>
    %308 = arith.mulf %301, %307 : vector<2x32xf32>
    %cst_54 = arith.constant dense<0.000000e+00> : vector<2x128xf32>
    %309 = tpu.matmul %308, %11, %cst_54 {dimension_numbers = #tpu.dot_dimension_numbers<[1], [0], [0], [1], [0, 0, 1, 1], [], []>} : vector<2x32xf32>, vector<32x128xf32>, vector<2x128xf32> -> vector<2x128xf32>
    %cst_55 = arith.constant dense<0.000000e+00> : vector<2x128xf32>
    %310 = tpu.matmul %289, %12, %cst_55 {dimension_numbers = #tpu.dot_dimension_numbers<[1], [0], [0], [1], [0, 0, 1, 1], [], []>} : vector<2x32xf32>, vector<32x128xf32>, vector<2x128xf32> -> vector<2x128xf32>
    %311 = arith.addf %309, %310 : vector<2x128xf32>
    %312 = arith.addf %311, %10 : vector<2x128xf32>
    %313 = vector.extract_strided_slice %312 {offsets = [0, 0], sizes = [2, 96], strides = [1, 1]} : vector<2x128xf32> to vector<2x96xf32>
    %314 = arith.negf %313 : vector<2x96xf32>
    %315 = math.exp %314 : vector<2x96xf32>
    %cst_56 = arith.constant 1.000000e+00 : f32
    %316 = vector.broadcast %cst_56 : f32 to vector<2x96xf32>
    %317 = arith.addf %316, %315 : vector<2x96xf32>
    %318 = arith.divf %316, %317 : vector<2x96xf32>
    %319 = vector.extract_strided_slice %318 {offsets = [0, 0], sizes = [2, 32], strides = [1, 1]} : vector<2x96xf32> to vector<2x32xf32>
    %320 = vector.extract_strided_slice %318 {offsets = [0, 32], sizes = [2, 32], strides = [1, 1]} : vector<2x96xf32> to vector<2x32xf32>
    %321 = vector.extract_strided_slice %318 {offsets = [0, 64], sizes = [2, 32], strides = [1, 1]} : vector<2x96xf32> to vector<2x32xf32>
    %322 = vector.extract_strided_slice %312 {offsets = [0, 96], sizes = [2, 32], strides = [1, 1]} : vector<2x128xf32> to vector<2x32xf32>
    %323 = math.tanh %322 : vector<2x32xf32>
    %324 = arith.mulf %320, %287 : vector<2x32xf32>
    %325 = arith.mulf %319, %323 : vector<2x32xf32>
    %326 = arith.addf %324, %325 : vector<2x32xf32>
    %327 = math.tanh %326 : vector<2x32xf32>
    %328 = arith.mulf %321, %327 : vector<2x32xf32>
    %c0_57 = arith.constant 0 : index
    %c0_58 = arith.constant 0 : index
    %329 = vector.load %arg7[%c0_57, %c0_58] : memref<32x4xf32, #tpu.memory_space<vmem>>, vector<32x4xf32>
    %cst_59 = arith.constant dense<0.000000e+00> : vector<2x4xf32>
    %330 = tpu.matmul %328, %329, %cst_59 {dimension_numbers = #tpu.dot_dimension_numbers<[1], [0], [0], [1], [0, 0, 1, 1], [], []>} : vector<2x32xf32>, vector<32x4xf32>, vector<2x4xf32> -> vector<2x4xf32>
    %c0_60 = arith.constant 0 : index
    %c0_61 = arith.constant 0 : index
    %331 = vector.load %arg8[%c0_60, %c0_61] : memref<1x4xf32, #tpu.memory_space<vmem>>, vector<1x4xf32>
    %332 = vector.shape_cast %331 : vector<1x4xf32> to vector<4xf32>
    %333 = vector.shape_cast %332 : vector<4xf32> to vector<1x4xf32>
    %334 = vector.broadcast %333 : vector<1x4xf32> to vector<2x4xf32>
    %335 = arith.addf %330, %334 : vector<2x4xf32>
    %c0_62 = arith.constant 0 : index
    %c0_63 = arith.constant 0 : index
    %336 = vector.load %arg9[%c0_62, %c0_63] : memref<2x4xf32, #tpu.memory_space<vmem>>, vector<2x4xf32>
    tpu.vector_store %arg9[%c0_62, %c0_63], %335 {strides = array<i32>} : memref<2x4xf32, #tpu.memory_space<vmem>>, vector<2x4xf32>,
    return
  }
}

</mosaic_0001>

<llo_original>
// kernel: base_lstm_forward.1
$region0: #{base_lstm_forward.1}
  #allocation0 [shape = 'u32[]', space=smem, size = 0x4, offset = 0x4, fixed_abs, tag = 'smem constant byte address 0x4 - core index']
  #allocation1 [shape = 'u32[72,128]{1,0:T(1,128)}', space=vmem, size = 0x9000, scoped, tag = 'internal scratch']
  %s0 = inlined_call_operand.vmem [shape: f32[16,32], index: 0, kind: input, shape index: {}]
  %s1 = inlined_call_operand.vmem [shape: f32[32,128], index: 1, kind: input, shape index: {}]
  %s2 = inlined_call_operand.vmem [shape: f32[32,128], index: 2, kind: input, shape index: {}]
  %s3 = inlined_call_operand.vmem [shape: f32[1,128], index: 3, kind: input, shape index: {}]
  %s4 = inlined_call_operand.hbm [shape: f32[32,128], index: 4, kind: input, shape index: {}]
  %s5 = inlined_call_operand.hbm [shape: f32[32,128], index: 5, kind: input, shape index: {}]
  %s6 = inlined_call_operand.vmem [shape: f32[1,128], index: 6, kind: input, shape index: {}]
  %s7 = inlined_call_operand.vmem [shape: f32[32,4], index: 7, kind: input, shape index: {}]
  %s8 = inlined_call_operand.vmem [shape: f32[1,4], index: 8, kind: input, shape index: {}]
  %s9 = inlined_call_operand.hbm [shape: f32[2,4], index: 9, kind: output, shape index: {}]
  %s10 = sld [smem:[#allocation0]]
  $region54: #{base_lstm_forward.1} parent=0
    _
  %s12 = ssub.s32 1, %s10
  %s13 = scalar_select 0, %s12, %s10
  $region1: #{base_lstm_forward.1} parent=0
    #allocation2 [shape = 'u8[16384]{0}', space=vmem, size = 0x4000, scoped, tag = 'input window, operand 4, single buffered']
    #allocation3 [shape = 's32[1]{0}', space=sflag, size = 0x4, scoped, tag = 'scoped memory for base_lstm_forward.1']
    #allocation4 [shape = 's32[1]{0}', space=sflag, size = 0x4, scoped, tag = 'scoped memory for base_lstm_forward.1']
    #allocation5 [shape = 'u8[16384]{0}', space=vmem, size = 0x4000, scoped, tag = 'input window, operand 5, single buffered']
    #allocation6 [shape = 's32[1]{0}', space=sflag, size = 0x4, scoped, tag = 'scoped memory for base_lstm_forward.1']
    #allocation7 [shape = 'u8[1024]{0}', space=vmem, size = 0x400, scoped, tag = 'output window, operand 0, single buffered']
    %14 = vsyncpa [#allocation3], 0
    %15 = vsyncpa [#allocation6], 0
    %16 = vsyncpa [#allocation4], 0
    // Predicated region
    $region2: #{base_lstm_forward.1} parent=1 // pred_check
      _
    $region3: #{base_lstm_forward.1} parent=1 // pred_check_branch
      %18 = sbr.rel (0) target = $region5
    $region4: #{base_lstm_forward.1} parent=1 // pred_region
      _
    $region5: #{base_lstm_forward.1} parent=1 // pred_fallthru
      _
    // Predicated region
    $region6: #{base_lstm_forward.1} parent=1 // pred_check
      _
    $region7: #{base_lstm_forward.1} parent=1 // pred_check_branch
      %20 = sbr.rel (0) target = $region9
    $region8: #{base_lstm_forward.1} parent=1 // pred_region
      _
    $region9: #{base_lstm_forward.1} parent=1 // pred_fallthru
      _
    // Predicated region
    $region10: #{base_lstm_forward.1} parent=1 // pred_check
      _
    $region11: #{base_lstm_forward.1} parent=1 // pred_check_branch
      %22 = sbr.rel (0) target = $region13
    $region12: #{base_lstm_forward.1} parent=1 // pred_region
      _
    $region13: #{base_lstm_forward.1} parent=1 // pred_fallthru
      _
    // Predicated region
    $region14: #{base_lstm_forward.1} parent=1 // pred_check
      _
    $region15: #{base_lstm_forward.1} parent=1 // pred_check_branch
      %24 = sbr.rel (0) target = $region17
    $region16: #{base_lstm_forward.1} parent=1 // pred_region
      _
    $region17: #{base_lstm_forward.1} parent=1 // pred_fallthru
      _
    // Predicated region
    $region18: #{base_lstm_forward.1} parent=1 // pred_check
      _
    $region19: #{base_lstm_forward.1} parent=1 // pred_check_branch
      %26 = sbr.rel (0) target = $region21
    $region20: #{base_lstm_forward.1} parent=1 // pred_region
      %28 = vsyncadd [#allocation3], 0
      %s29 = sshll.u32 %s4, 4
      %s30 = int_to_ptr.hbm [resolvable:$true] %s29
      %s31 = sshll.u32 [#allocation2], 4
      %s32 = int_to_ptr.vmem [resolvable:$true] %s31
      %37 = dma.hbm_to_vmem [thread:$0]  %s30, 512, %s32, [#allocation3], 128, 128, 8
    $region21: #{base_lstm_forward.1} parent=1 // pred_fallthru
      _
    // Predicated region
    $region22: #{base_lstm_forward.1} parent=1 // pred_check
      _
    $region23: #{base_lstm_forward.1} parent=1 // pred_check_branch
      %39 = sbr.rel (0) target = $region25
    $region24: #{base_lstm_forward.1} parent=1 // pred_region
      %41 = vsyncadd [#allocation6], 0
      %s42 = sshll.u32 %s5, 4
      %s43 = int_to_ptr.hbm [resolvable:$true] %s42
      %s44 = sshll.u32 [#allocation5], 4
      %s45 = int_to_ptr.vmem [resolvable:$true] %s44
      %50 = dma.hbm_to_vmem [thread:$0]  %s43, 512, %s45, [#allocation6], 128, 128, 8
    $region25: #{base_lstm_forward.1} parent=1 // pred_fallthru
      _
    // Predicated region
    $region26: #{base_lstm_forward.1} parent=1 // pred_check
      _
    $region27: #{base_lstm_forward.1} parent=1 // pred_check_branch
      %52 = sbr.rel (0) target = $region29
    $region28: #{base_lstm_forward.1} parent=1 // pred_region
      _
    $region29: #{base_lstm_forward.1} parent=1 // pred_fallthru
      _
    // Predicated region
    $region30: #{base_lstm_forward.1} parent=1 // pred_check
      _
    $region31: #{base_lstm_forward.1} parent=1 // pred_check_branch
      %54 = sbr.rel (0) target = $region33
    $region32: #{base_lstm_forward.1} parent=1 // pred_region
      _
    $region33: #{base_lstm_forward.1} parent=1 // pred_fallthru
      _
    // Predicated region
    $region34: #{base_lstm_forward.1} parent=1 // pred_check
      _
    $region35: #{base_lstm_forward.1} parent=1 // pred_check_branch
      %56 = sbr.rel (0) target = $region37
    $region36: #{base_lstm_forward.1} parent=1 // pred_region
      _
    $region37: #{base_lstm_forward.1} parent=1 // pred_fallthru
      _
    // Predicated region
    $region38: #{base_lstm_forward.1} parent=1 // pred_check
      _
    $region39: #{base_lstm_forward.1} parent=1 // pred_check_branch
      %58 = sbr.rel (0) target = $region41
    $region40: #{base_lstm_forward.1} parent=1 // pred_region
      %60 = dma.done [#allocation3], 512
    $region41: #{base_lstm_forward.1} parent=1 // pred_fallthru
      _
    // Predicated region
    $region42: #{base_lstm_forward.1} parent=1 // pred_check
      _
    $region43: #{base_lstm_forward.1} parent=1 // pred_check_branch
      %62 = sbr.rel (0) target = $region45
    $region44: #{base_lstm_forward.1} parent=1 // pred_region
      %64 = dma.done [#allocation6], 512
    $region45: #{base_lstm_forward.1} parent=1 // pred_fallthru
      _
    %v65 = vld [vmem:[%s0] sm:$0xff]
    %v66 = vld [vmem:[%s0 + $0x8] sm:$0xff]
    %v67 = vld [vmem:[%s1] sm:$0xff]
    %v68 = vld [vmem:[%s1 + $0x8] sm:$0xff]
    %v69 = vld [vmem:[%s1 + $0x10] sm:$0xff]
    %v70 = vld [vmem:[%s1 + $0x18] sm:$0xff]
    %v71 = vld [vmem:[%s3] sm:$0x1]
    %v73 = vperm.slane %v71, 0
    %vm75 = vcmask 261120
    %v77 = vsel %vm75, %v65, 0
    %v80 = vsel %vm75, %v66, 0
    %82 = vmatpush.msra.mxu0 0.0
    %83 = vmatpush.msra.mxu0 0.0
    %84 = vmatpush.msra.mxu0 0.0
    %85 = vmatpush.msra.mxu0 0.0
    %86 = vmatpush.msra.mxu0 0.0
    %87 = vmatpush.msra.mxu0 0.0
    %88 = vmatpush.msra.mxu0 0.0
    %89 = vmatpush.msra.mxu0 0.0
    %90 = vmatpush.msra.mxu0 0.0
    %91 = vmatpush.msra.mxu0 0.0
    %92 = vmatpush.msra.mxu0 0.0
    %93 = vmatpush.msra.mxu0 0.0
    %94 = vmatpush.msra.mxu0 %v70
    %95 = vmatpush.msra.mxu0 %v69
    %96 = vmatpush.msra.mxu0 %v68
    %97 = vmatpush.msra.mxu0 %v67
    %98 = vmatmul.f32.gmra.mxu0 %v77
    %v99 = vpop.f32.mrf.mxu0
    %v100 = vadd.f32 %v73, %v99
    %101 = vmatmul.f32.gmra.mxu0 %v80
    %v102 = vpop.f32.mrf.mxu0
    %v103 = vadd.f32 %v73, %v102
    %104 = vdwg.mxu0
    %v105 = vld [vmem:[%s2] sm:$0xff]
    %v106 = vld [vmem:[%s2 + $0x8] sm:$0xff]
    %v107 = vld [vmem:[%s2 + $0x10] sm:$0xff]
    %v108 = vld [vmem:[%s2 + $0x18] sm:$0xff]
    %v109 = vld [vmem:[%s6] sm:$0x1]
    %v111 = vperm.slane %v109, 0
    %v113 = vld [vmem:[#allocation2] sm:$0xff]
    %v114 = vld [vmem:[#allocation2 + $0x8] sm:$0xff]
    %v115 = vld [vmem:[#allocation2 + $0x10] sm:$0xff]
    %v116 = vld [vmem:[#allocation2 + $0x18] sm:$0xff]
    %v117 = vld [vmem:[#allocation5] sm:$0xff]
    %v118 = vld [vmem:[#allocation5 + $0x8] sm:$0xff]
    %v119 = vld [vmem:[#allocation5 + $0x10] sm:$0xff]
    %v120 = vld [vmem:[#allocation5 + $0x18] sm:$0xff]
    %v122 = vsel %vm75, 0.0, 0
    %124 = vmatpush.msra.mxu0 0.0
    %125 = vmatpush.msra.mxu0 0.0
    %126 = vmatpush.msra.mxu0 0.0
    %127 = vmatpush.msra.mxu0 0.0
    %128 = vmatpush.msra.mxu0 0.0
    %129 = vmatpush.msra.mxu0 0.0
    %130 = vmatpush.msra.mxu0 0.0
    %131 = vmatpush.msra.mxu0 0.0
    %132 = vmatpush.msra.mxu0 0.0
    %133 = vmatpush.msra.mxu0 0.0
    %134 = vmatpush.msra.mxu0 0.0
    %135 = vmatpush.msra.mxu0 0.0
    %136 = vmatpush.msra.mxu0 %v108
    %137 = vmatpush.msra.mxu0 %v107
    %138 = vmatpush.msra.mxu0 %v106
    %139 = vmatpush.msra.mxu0 %v105
    %140 = vmatmul.f32.gmra.mxu0 %v122
    %v141 = vpop.f32.mrf.mxu0
    %v142 = vadd.f32 0.0, %v141
    %143 = vdwg.mxu0
    %v144 = vadd.f32 %v100, %v142
    %v145 = vxor.u32 %v144, 2147483648
    %v146 = vmul.f32 %v145, 1.442695
    %v147 = vpow.pop %v146
    %v148 = vadd.f32 %v147, 1.0
    %v149 = vrcp.pop %v148
    %v150 = vmul.f32 %v148, %v149
    %v151 = vsub.f32 1.0, %v150
    %v152 = vmul.f32 %v149, %v151
    %v153 = vadd.f32 %v149, %v152
    %vm154 = vweird.f32 %v148
    %vm155 = vweird.f32 %v149
    %vm156 = vmor %vm154, %vm155
    %v157 = vsel %vm156, %v149, %v153
    %v158 = vand.u32 2147483647, %v148
    %vm159 = vcmp.eq.f32.partialorder %v158, 8.507059e+37
    %v160 = vand.u32 %v148, 2147483648
    %v161 = vor.u32 1.1754944e-38, %v160
    %v162 = vsel %vm159, %v161, %v157
    %v163 = vmul.f32 1.0, %v162
    %v164 = vtanh.pop %v144
    %v165 = vmul.f32 %v163, 0.0
    %167 = vrot.lane.b32.xlu0 %v164, 32
    %v168 = vpop.permute.xlu0 %167
    %v170 = vmul.f32 %v163, %v168
    %172 = vrot.lane.b32.xlu0 %v170, 32
    %v173 = vpop.permute.xlu0 %172
    %v175 = vadd.f32 %v165, %v173
    %v176 = vtanh.pop %v175
    %178 = vrot.lane.b32.xlu0 %v176, 32
    %v179 = vpop.permute.xlu0 %178
    %v181 = vmul.f32 %v163, %v179
    %182 = vmatpush.msra.mxu0 0.0
    %183 = vmatpush.msra.mxu0 0.0
    %184 = vmatpush.msra.mxu0 0.0
    %185 = vmatpush.msra.mxu0 0.0
    %186 = vmatpush.msra.mxu0 0.0
    %187 = vmatpush.msra.mxu0 0.0
    %188 = vmatpush.msra.mxu0 0.0
    %189 = vmatpush.msra.mxu0 0.0
    %190 = vmatpush.msra.mxu0 0.0
    %191 = vmatpush.msra.mxu0 0.0
    %192 = vmatpush.msra.mxu0 0.0
    %193 = vmatpush.msra.mxu0 0.0
    %194 = vmatpush.msra.mxu0 %v120
    %195 = vmatpush.msra.mxu0 %v119
    %196 = vmatpush.msra.mxu0 %v118
    %197 = vmatpush.msra.mxu0 %v117
    %198 = vmatmul.f32.gmra.mxu0 %v122
    %v199 = vpop.f32.mrf.mxu0
    %v200 = vadd.f32 0.0, %v199
    %201 = vdwg.mxu0
    %203 = vrot.lane.b32.xlu0 %v181, 64
    %v204 = vpop.permute.xlu0 %203
    %v205 = vsel %vm75, %v204, 0
    %207 = vmatpush.msra.mxu0 0.0
    %208 = vmatpush.msra.mxu0 0.0
    %209 = vmatpush.msra.mxu0 0.0
    %210 = vmatpush.msra.mxu0 0.0
    %211 = vmatpush.msra.mxu0 0.0
    %212 = vmatpush.msra.mxu0 0.0
    %213 = vmatpush.msra.mxu0 0.0
    %214 = vmatpush.msra.mxu0 0.0
    %215 = vmatpush.msra.mxu0 0.0
    %216 = vmatpush.msra.mxu0 0.0
    %217 = vmatpush.msra.mxu0 0.0
    %218 = vmatpush.msra.mxu0 0.0
    %219 = vmatpush.msra.mxu0 %v116
    %220 = vmatpush.msra.mxu0 %v115
    %221 = vmatpush.msra.mxu0 %v114
    %222 = vmatpush.msra.mxu0 %v113
    %223 = vmatmul.f32.gmra.mxu0 %v205
    %v224 = vpop.f32.mrf.mxu0
    %v225 = vadd.f32 %v200, %v224
    %226 = vdwg.mxu0
    %v227 = vadd.f32 %v225, %v111
    %v228 = vxor.u32 %v227, 2147483648
    %v229 = vmul.f32 %v228, 1.442695
    %v230 = vpow.pop %v229
    %v231 = vadd.f32 %v230, 1.0
    %v232 = vrcp.pop %v231
    %v233 = vmul.f32 %v231, %v232
    %v234 = vsub.f32 1.0, %v233
    %v235 = vmul.f32 %v232, %v234
    %v236 = vadd.f32 %v232, %v235
    %vm237 = vweird.f32 %v231
    %vm238 = vweird.f32 %v232
    %vm239 = vmor %vm237, %vm238
    %v240 = vsel %vm239, %v232, %v236
    %v241 = vand.u32 2147483647, %v231
    %vm242 = vcmp.eq.f32.partialorder %v241, 8.507059e+37
    %v243 = vand.u32 %v231, 2147483648
    %v244 = vor.u32 1.1754944e-38, %v243
    %v245 = vsel %vm242, %v244, %v240
    %v246 = vmul.f32 1.0, %v245
    %v247 = vtanh.pop %v227
    %v248 = vmul.f32 %v246, 0.0
    %250 = vrot.lane.b32.xlu0 %v247, 32
    %v251 = vpop.permute.xlu0 %250
    %v253 = vmul.f32 %v246, %v251
    %255 = vrot.lane.b32.xlu0 %v253, 32
    %v256 = vpop.permute.xlu0 %255
    %v258 = vadd.f32 %v248, %v256
    %v259 = vtanh.pop %v258
    %261 = vrot.lane.b32.xlu0 %v259, 32
    %v262 = vpop.permute.xlu0 %261
    %v264 = vmul.f32 %v246, %v262
    %265 = vmatpush.msra.mxu0 0.0
    %266 = vmatpush.msra.mxu0 0.0
    %267 = vmatpush.msra.mxu0 0.0
    %268 = vmatpush.msra.mxu0 0.0
    %269 = vmatpush.msra.mxu0 0.0
    %270 = vmatpush.msra.mxu0 0.0
    %271 = vmatpush.msra.mxu0 0.0
    %272 = vmatpush.msra.mxu0 0.0
    %273 = vmatpush.msra.mxu0 0.0
    %274 = vmatpush.msra.mxu0 0.0
    %275 = vmatpush.msra.mxu0 0.0
    %276 = vmatpush.msra.mxu0 0.0
    %277 = vmatpush.msra.mxu0 %v108
    %278 = vmatpush.msra.mxu0 %v107
    %279 = vmatpush.msra.mxu0 %v106
    %280 = vmatpush.msra.mxu0 %v105
    %281 = vmatmul.f32.gmra.mxu0 %v205
    %v282 = vpop.f32.mrf.mxu0
    %v283 = vadd.f32 0.0, %v282
    %284 = vdwg.mxu0
    %v286 = vrot.slane %v283, 6
    %v288 = vadd.f32 %v100, %v286
    %v289 = vxor.u32 %v288, 2147483648
    %v290 = vmul.f32 %v289, 1.442695
    %v291 = vpow.pop %v290
    %v292 = vadd.f32 %v291, 1.0
    %v293 = vrcp.pop %v292
    %v294 = vmul.f32 %v292, %v293
    %v295 = vsub.f32 1.0, %v294
    %v296 = vmul.f32 %v293, %v295
    %v297 = vadd.f32 %v293, %v296
    %vm298 = vweird.f32 %v292
    %vm299 = vweird.f32 %v293
    %vm300 = vmor %vm298, %vm299
    %v301 = vsel %vm300, %v293, %v297
    %v302 = vand.u32 2147483647, %v292
    %vm303 = vcmp.eq.f32.partialorder %v302, 8.507059e+37
    %v304 = vand.u32 %v292, 2147483648
    %v305 = vor.u32 1.1754944e-38, %v304
    %v306 = vsel %vm303, %v305, %v301
    %v307 = vmul.f32 1.0, %v306
    %v308 = vtanh.pop %v288
    %v310 = vrot.slane %v175, 6
    %v312 = vmul.f32 %v307, %v310
    %314 = vrot.lane.b32.xlu0 %v308, 32
    %v315 = vpop.permute.xlu0 %314
    %v317 = vmul.f32 %v307, %v315
    %319 = vrot.lane.b32.xlu0 %v317, 32
    %v320 = vpop.permute.xlu0 %319
    %v322 = vadd.f32 %v312, %v320
    %v323 = vtanh.pop %v322
    %325 = vrot.lane.b32.xlu0 %v323, 32
    %v326 = vpop.permute.xlu0 %325
    %v328 = vmul.f32 %v307, %v326
    %330 = vrot.lane.b32.xlu0 %v264, 64
    %v331 = vpop.permute.xlu0 %330
    %v332 = vsel %vm75, %v331, 0
    %334 = vmatpush.msra.mxu0 0.0
    %335 = vmatpush.msra.mxu0 0.0
    %336 = vmatpush.msra.mxu0 0.0
    %337 = vmatpush.msra.mxu0 0.0
    %338 = vmatpush.msra.mxu0 0.0
    %339 = vmatpush.msra.mxu0 0.0
    %340 = vmatpush.msra.mxu0 0.0
    %341 = vmatpush.msra.mxu0 0.0
    %342 = vmatpush.msra.mxu0 0.0
    %343 = vmatpush.msra.mxu0 0.0
    %344 = vmatpush.msra.mxu0 0.0
    %345 = vmatpush.msra.mxu0 0.0
    %346 = vmatpush.msra.mxu0 %v120
    %347 = vmatpush.msra.mxu0 %v119
    %348 = vmatpush.msra.mxu0 %v118
    %349 = vmatpush.msra.mxu0 %v117
    %350 = vmatmul.f32.gmra.mxu0 %v332
    %v351 = vpop.f32.mrf.mxu0
    %v352 = vadd.f32 0.0, %v351
    %353 = vdwg.mxu0
    %v355 = vrot.slane %v328, 2
    %356 = vrot.lane.b32.xlu0 %v355, 64
    %v357 = vpop.permute.xlu0 %356
    %v358 = vsel %vm75, %v357, 0
    %360 = vmatpush.msra.mxu0 0.0
    %361 = vmatpush.msra.mxu0 0.0
    %362 = vmatpush.msra.mxu0 0.0
    %363 = vmatpush.msra.mxu0 0.0
    %364 = vmatpush.msra.mxu0 0.0
    %365 = vmatpush.msra.mxu0 0.0
    %366 = vmatpush.msra.mxu0 0.0
    %367 = vmatpush.msra.mxu0 0.0
    %368 = vmatpush.msra.mxu0 0.0
    %369 = vmatpush.msra.mxu0 0.0
    %370 = vmatpush.msra.mxu0 0.0
    %371 = vmatpush.msra.mxu0 0.0
    %372 = vmatpush.msra.mxu0 %v116
    %373 = vmatpush.msra.mxu0 %v115
    %374 = vmatpush.msra.mxu0 %v114
    %375 = vmatpush.msra.mxu0 %v113
    %376 = vmatmul.f32.gmra.mxu0 %v358
    %v377 = vpop.f32.mrf.mxu0
    %v378 = vadd.f32 %v352, %v377
    %379 = vdwg.mxu0
    %v380 = vadd.f32 %v378, %v111
    %v381 = vxor.u32 %v380, 2147483648
    %v382 = vmul.f32 %v381, 1.442695
    %v383 = vpow.pop %v382
    %v384 = vadd.f32 %v383, 1.0
    %v385 = vrcp.pop %v384
    %v386 = vmul.f32 %v384, %v385
    %v387 = vsub.f32 1.0, %v386
    %v388 = vmul.f32 %v385, %v387
    %v389 = vadd.f32 %v385, %v388
    %vm390 = vweird.f32 %v384
    %vm391 = vweird.f32 %v385
    %vm392 = vmor %vm390, %vm391
    %v393 = vsel %vm392, %v385, %v389
    %v394 = vand.u32 2147483647, %v384
    %vm395 = vcmp.eq.f32.partialorder %v394, 8.507059e+37
    %v396 = vand.u32 %v384, 2147483648
    %v397 = vor.u32 1.1754944e-38, %v396
    %v398 = vsel %vm395, %v397, %v393
    %v399 = vmul.f32 1.0, %v398
    %v400 = vtanh.pop %v380
    %v401 = vmul.f32 %v399, %v258
    %403 = vrot.lane.b32.xlu0 %v400, 32
    %v404 = vpop.permute.xlu0 %403
    %v406 = vmul.f32 %v399, %v404
    %408 = vrot.lane.b32.xlu0 %v406, 32
    %v409 = vpop.permute.xlu0 %408
    %v411 = vadd.f32 %v401, %v409
    %v412 = vtanh.pop %v411
    %414 = vrot.lane.b32.xlu0 %v412, 32
    %v415 = vpop.permute.xlu0 %414
    %v417 = vmul.f32 %v399, %v415
    %418 = vmatpush.msra.mxu0 0.0
    %419 = vmatpush.msra.mxu0 0.0
    %420 = vmatpush.msra.mxu0 0.0
    %421 = vmatpush.msra.mxu0 0.0
    %422 = vmatpush.msra.mxu0 0.0
    %423 = vmatpush.msra.mxu0 0.0
    %424 = vmatpush.msra.mxu0 0.0
    %425 = vmatpush.msra.mxu0 0.0
    %426 = vmatpush.msra.mxu0 0.0
    %427 = vmatpush.msra.mxu0 0.0
    %428 = vmatpush.msra.mxu0 0.0
    %429 = vmatpush.msra.mxu0 0.0
    %430 = vmatpush.msra.mxu0 %v108
    %431 = vmatpush.msra.mxu0 %v107
    %432 = vmatpush.msra.mxu0 %v106
    %433 = vmatpush.msra.mxu0 %v105
    %434 = vmatmul.f32.gmra.mxu0 %v358
    %v435 = vpop.f32.mrf.mxu0
    %v436 = vadd.f32 0.0, %v435
    %437 = vdwg.mxu0
    %v439 = vrot.slane %v436, 4
    %v441 = vadd.f32 %v100, %v439
    %v442 = vxor.u32 %v441, 2147483648
    %v443 = vmul.f32 %v442, 1.442695
    %v444 = vpow.pop %v443
    %v445 = vadd.f32 %v444, 1.0
    %v446 = vrcp.pop %v445
    %v447 = vmul.f32 %v445, %v446
    %v448 = vsub.f32 1.0, %v447
    %v449 = vmul.f32 %v446, %v448
    %v450 = vadd.f32 %v446, %v449
    %vm451 = vweird.f32 %v445
    %vm452 = vweird.f32 %v446
    %vm453 = vmor %vm451, %vm452
    %v454 = vsel %vm453, %v446, %v450
    %v455 = vand.u32 2147483647, %v445
    %vm456 = vcmp.eq.f32.partialorder %v455, 8.507059e+37
    %v457 = vand.u32 %v445, 2147483648
    %v458 = vor.u32 1.1754944e-38, %v457
    %v459 = vsel %vm456, %v458, %v454
    %v460 = vmul.f32 1.0, %v459
    %v461 = vtanh.pop %v441
    %v463 = vrot.slane %v322, 6
    %v465 = vmul.f32 %v460, %v463
    %467 = vrot.lane.b32.xlu0 %v461, 32
    %v468 = vpop.permute.xlu0 %467
    %v470 = vmul.f32 %v460, %v468
    %472 = vrot.lane.b32.xlu0 %v470, 32
    %v473 = vpop.permute.xlu0 %472
    %v475 = vadd.f32 %v465, %v473
    %v476 = vtanh.pop %v475
    %478 = vrot.lane.b32.xlu0 %v476, 32
    %v479 = vpop.permute.xlu0 %478
    %v481 = vmul.f32 %v460, %v479
    %483 = vrot.lane.b32.xlu0 %v417, 64
    %v484 = vpop.permute.xlu0 %483
    %v485 = vsel %vm75, %v484, 0
    %487 = vmatpush.msra.mxu0 0.0
    %488 = vmatpush.msra.mxu0 0.0
    %489 = vmatpush.msra.mxu0 0.0
    %490 = vmatpush.msra.mxu0 0.0
    %491 = vmatpush.msra.mxu0 0.0
    %492 = vmatpush.msra.mxu0 0.0
    %493 = vmatpush.msra.mxu0 0.0
    %494 = vmatpush.msra.mxu0 0.0
    %495 = vmatpush.msra.mxu0 0.0
    %496 = vmatpush.msra.mxu0 0.0
    %497 = vmatpush.msra.mxu0 0.0
    %498 = vmatpush.msra.mxu0 0.0
    %499 = vmatpush.msra.mxu0 %v120
    %500 = vmatpush.msra.mxu0 %v119
    %501 = vmatpush.msra.mxu0 %v118
    %502 = vmatpush.msra.mxu0 %v117
    %503 = vmatmul.f32.gmra.mxu0 %v485
    %v504 = vpop.f32.mrf.mxu0
    %v505 = vadd.f32 0.0, %v504
    %506 = vdwg.mxu0
    %v508 = vrot.slane %v481, 4
    %509 = vrot.lane.b32.xlu0 %v508, 64
    %v510 = vpop.permute.xlu0 %509
    %v511 = vsel %vm75, %v510, 0
    %513 = vmatpush.msra.mxu0 0.0
    %514 = vmatpush.msra.mxu0 0.0
    %515 = vmatpush.msra.mxu0 0.0
    %516 = vmatpush.msra.mxu0 0.0
    %517 = vmatpush.msra.mxu0 0.0
    %518 = vmatpush.msra.mxu0 0.0
    %519 = vmatpush.msra.mxu0 0.0
    %520 = vmatpush.msra.mxu0 0.0
    %521 = vmatpush.msra.mxu0 0.0
    %522 = vmatpush.msra.mxu0 0.0
    %523 = vmatpush.msra.mxu0 0.0
    %524 = vmatpush.msra.mxu0 0.0
    %525 = vmatpush.msra.mxu0 %v116
    %526 = vmatpush.msra.mxu0 %v115
    %527 = vmatpush.msra.mxu0 %v114
    %528 = vmatpush.msra.mxu0 %v113
    %529 = vmatmul.f32.gmra.mxu0 %v511
    %v530 = vpop.f32.mrf.mxu0
    %v531 = vadd.f32 %v505, %v530
    %532 = vdwg.mxu0
    %v533 = vadd.f32 %v531, %v111
    %v534 = vxor.u32 %v533, 2147483648
    %v535 = vmul.f32 %v534, 1.442695
    %v536 = vpow.pop %v535
    %v537 = vadd.f32 %v536, 1.0
    %v538 = vrcp.pop %v537
    %v539 = vmul.f32 %v537, %v538
    %v540 = vsub.f32 1.0, %v539
    %v541 = vmul.f32 %v538, %v540
    %v542 = vadd.f32 %v538, %v541
    %vm543 = vweird.f32 %v537
    %vm544 = vweird.f32 %v538
    %vm545 = vmor %vm543, %vm544
    %v546 = vsel %vm545, %v538, %v542
    %v547 = vand.u32 2147483647, %v537
    %vm548 = vcmp.eq.f32.partialorder %v547, 8.507059e+37
    %v549 = vand.u32 %v537, 2147483648
    %v550 = vor.u32 1.1754944e-38, %v549
    %v551 = vsel %vm548, %v550, %v546
    %v552 = vmul.f32 1.0, %v551
    %v553 = vtanh.pop %v533
    %v554 = vmul.f32 %v552, %v411
    %556 = vrot.lane.b32.xlu0 %v553, 32
    %v557 = vpop.permute.xlu0 %556
    %v559 = vmul.f32 %v552, %v557
    %561 = vrot.lane.b32.xlu0 %v559, 32
    %v562 = vpop.permute.xlu0 %561
    %v564 = vadd.f32 %v554, %v562
    %v565 = vtanh.pop %v564
    %567 = vrot.lane.b32.xlu0 %v565, 32
    %v568 = vpop.permute.xlu0 %567
    %v570 = vmul.f32 %v552, %v568
    %571 = vmatpush.msra.mxu0 0.0
    %572 = vmatpush.msra.mxu0 0.0
    %573 = vmatpush.msra.mxu0 0.0
    %574 = vmatpush.msra.mxu0 0.0
    %575 = vmatpush.msra.mxu0 0.0
    %576 = vmatpush.msra.mxu0 0.0
    %577 = vmatpush.msra.mxu0 0.0
    %578 = vmatpush.msra.mxu0 0.0
    %579 = vmatpush.msra.mxu0 0.0
    %580 = vmatpush.msra.mxu0 0.0
    %581 = vmatpush.msra.mxu0 0.0
    %582 = vmatpush.msra.mxu0 0.0
    %583 = vmatpush.msra.mxu0 %v108
    %584 = vmatpush.msra.mxu0 %v107
    %585 = vmatpush.msra.mxu0 %v106
    %586 = vmatpush.msra.mxu0 %v105
    %587 = vmatmul.f32.gmra.mxu0 %v511
    %v588 = vpop.f32.mrf.mxu0
    %v589 = vadd.f32 0.0, %v588
    %590 = vdwg.mxu0
    %v592 = vrot.slane %v589, 2
    %v594 = vadd.f32 %v100, %v592
    %v595 = vxor.u32 %v594, 2147483648
    %v596 = vmul.f32 %v595, 1.442695
    %v597 = vpow.pop %v596
    %v598 = vadd.f32 %v597, 1.0
    %v599 = vrcp.pop %v598
    %v600 = vmul.f32 %v598, %v599
    %v601 = vsub.f32 1.0, %v600
    %v602 = vmul.f32 %v599, %v601
    %v603 = vadd.f32 %v599, %v602
    %vm604 = vweird.f32 %v598
    %vm605 = vweird.f32 %v599
    %vm606 = vmor %vm604, %vm605
    %v607 = vsel %vm606, %v599, %v603
    %v608 = vand.u32 2147483647, %v598
    %vm609 = vcmp.eq.f32.partialorder %v608, 8.507059e+37
    %v610 = vand.u32 %v598, 2147483648
    %v611 = vor.u32 1.1754944e-38, %v610
    %v612 = vsel %vm609, %v611, %v607
    %v613 = vmul.f32 1.0, %v612
    %v614 = vtanh.pop %v594
    %v616 = vrot.slane %v475, 6
    %v618 = vmul.f32 %v613, %v616
    %620 = vrot.lane.b32.xlu0 %v614, 32
    %v621 = vpop.permute.xlu0 %620
    %v623 = vmul.f32 %v613, %v621
    %625 = vrot.lane.b32.xlu0 %v623, 32
    %v626 = vpop.permute.xlu0 %625
    %v628 = vadd.f32 %v618, %v626
    %v629 = vtanh.pop %v628
    %631 = vrot.lane.b32.xlu0 %v629, 32
    %v632 = vpop.permute.xlu0 %631
    %v634 = vmul.f32 %v613, %v632
    %636 = vrot.lane.b32.xlu0 %v570, 64
    %v637 = vpop.permute.xlu0 %636
    %v638 = vsel %vm75, %v637, 0
    %640 = vmatpush.msra.mxu0 0.0
    %641 = vmatpush.msra.mxu0 0.0
    %642 = vmatpush.msra.mxu0 0.0
    %643 = vmatpush.msra.mxu0 0.0
    %644 = vmatpush.msra.mxu0 0.0
    %645 = vmatpush.msra.mxu0 0.0
    %646 = vmatpush.msra.mxu0 0.0
    %647 = vmatpush.msra.mxu0 0.0
    %648 = vmatpush.msra.mxu0 0.0
    %649 = vmatpush.msra.mxu0 0.0
    %650 = vmatpush.msra.mxu0 0.0
    %651 = vmatpush.msra.mxu0 0.0
    %652 = vmatpush.msra.mxu0 %v120
    %653 = vmatpush.msra.mxu0 %v119
    %654 = vmatpush.msra.mxu0 %v118
    %655 = vmatpush.msra.mxu0 %v117
    %656 = vmatmul.f32.gmra.mxu0 %v638
    %v657 = vpop.f32.mrf.mxu0
    %v658 = vadd.f32 0.0, %v657
    %659 = vdwg.mxu0
    %v661 = vrot.slane %v634, 6
    %662 = vrot.lane.b32.xlu0 %v661, 64
    %v663 = vpop.permute.xlu0 %662
    %v664 = vsel %vm75, %v663, 0
    %666 = vmatpush.msra.mxu0 0.0
    %667 = vmatpush.msra.mxu0 0.0
    %668 = vmatpush.msra.mxu0 0.0
    %669 = vmatpush.msra.mxu0 0.0
    %670 = vmatpush.msra.mxu0 0.0
    %671 = vmatpush.msra.mxu0 0.0
    %672 = vmatpush.msra.mxu0 0.0
    %673 = vmatpush.msra.mxu0 0.0
    %674 = vmatpush.msra.mxu0 0.0
    %675 = vmatpush.msra.mxu0 0.0
    %676 = vmatpush.msra.mxu0 0.0
    %677 = vmatpush.msra.mxu0 0.0
    %678 = vmatpush.msra.mxu0 %v116
    %679 = vmatpush.msra.mxu0 %v115
    %680 = vmatpush.msra.mxu0 %v114
    %681 = vmatpush.msra.mxu0 %v113
    %682 = vmatmul.f32.gmra.mxu0 %v664
    %v683 = vpop.f32.mrf.mxu0
    %v684 = vadd.f32 %v658, %v683
    %685 = vdwg.mxu0
    %v686 = vadd.f32 %v684, %v111
    %v687 = vxor.u32 %v686, 2147483648
    %v688 = vmul.f32 %v687, 1.442695
    %v689 = vpow.pop %v688
    %v690 = vadd.f32 %v689, 1.0
    %v691 = vrcp.pop %v690
    %v692 = vmul.f32 %v690, %v691
    %v693 = vsub.f32 1.0, %v692
    %v694 = vmul.f32 %v691, %v693
    %v695 = vadd.f32 %v691, %v694
    %vm696 = vweird.f32 %v690
    %vm697 = vweird.f32 %v691
    %vm698 = vmor %vm696, %vm697
    %v699 = vsel %vm698, %v691, %v695
    %v700 = vand.u32 2147483647, %v690
    %vm701 = vcmp.eq.f32.partialorder %v700, 8.507059e+37
    %v702 = vand.u32 %v690, 2147483648
    %v703 = vor.u32 1.1754944e-38, %v702
    %v704 = vsel %vm701, %v703, %v699
    %v705 = vmul.f32 1.0, %v704
    %v706 = vtanh.pop %v686
    %v707 = vmul.f32 %v705, %v564
    %709 = vrot.lane.b32.xlu0 %v706, 32
    %v710 = vpop.permute.xlu0 %709
    %v712 = vmul.f32 %v705, %v710
    %714 = vrot.lane.b32.xlu0 %v712, 32
    %v715 = vpop.permute.xlu0 %714
    %v717 = vadd.f32 %v707, %v715
    %v718 = vtanh.pop %v717
    %720 = vrot.lane.b32.xlu0 %v718, 32
    %v721 = vpop.permute.xlu0 %720
    %v723 = vmul.f32 %v705, %v721
    %724 = vmatpush.msra.mxu0 0.0
    %725 = vmatpush.msra.mxu0 0.0
    %726 = vmatpush.msra.mxu0 0.0
    %727 = vmatpush.msra.mxu0 0.0
    %728 = vmatpush.msra.mxu0 0.0
    %729 = vmatpush.msra.mxu0 0.0
    %730 = vmatpush.msra.mxu0 0.0
    %731 = vmatpush.msra.mxu0 0.0
    %732 = vmatpush.msra.mxu0 0.0
    %733 = vmatpush.msra.mxu0 0.0
    %734 = vmatpush.msra.mxu0 0.0
    %735 = vmatpush.msra.mxu0 0.0
    %736 = vmatpush.msra.mxu0 %v108
    %737 = vmatpush.msra.mxu0 %v107
    %738 = vmatpush.msra.mxu0 %v106
    %739 = vmatpush.msra.mxu0 %v105
    %740 = vmatmul.f32.gmra.mxu0 %v664
    %v741 = vpop.f32.mrf.mxu0
    %v742 = vadd.f32 0.0, %v741
    %743 = vdwg.mxu0
    %v744 = vadd.f32 %v103, %v742
    %v745 = vxor.u32 %v744, 2147483648
    %v746 = vmul.f32 %v745, 1.442695
    %v747 = vpow.pop %v746
    %v748 = vadd.f32 %v747, 1.0
    %v749 = vrcp.pop %v748
    %v750 = vmul.f32 %v748, %v749
    %v751 = vsub.f32 1.0, %v750
    %v752 = vmul.f32 %v749, %v751
    %v753 = vadd.f32 %v749, %v752
    %vm754 = vweird.f32 %v748
    %vm755 = vweird.f32 %v749
    %vm756 = vmor %vm754, %vm755
    %v757 = vsel %vm756, %v749, %v753
    %v758 = vand.u32 2147483647, %v748
    %vm759 = vcmp.eq.f32.partialorder %v758, 8.507059e+37
    %v760 = vand.u32 %v748, 2147483648
    %v761 = vor.u32 1.1754944e-38, %v760
    %v762 = vsel %vm759, %v761, %v757
    %v763 = vmul.f32 1.0, %v762
    %v764 = vtanh.pop %v744
    %v766 = vrot.slane %v628, 6
    %v768 = vmul.f32 %v763, %v766
    %770 = vrot.lane.b32.xlu0 %v764, 32
    %v771 = vpop.permute.xlu0 %770
    %v773 = vmul.f32 %v763, %v771
    %775 = vrot.lane.b32.xlu0 %v773, 32
    %v776 = vpop.permute.xlu0 %775
    %v778 = vadd.f32 %v768, %v776
    %v779 = vtanh.pop %v778
    %781 = vrot.lane.b32.xlu0 %v779, 32
    %v782 = vpop.permute.xlu0 %781
    %v784 = vmul.f32 %v763, %v782
    %786 = vrot.lane.b32.xlu0 %v723, 64
    %v787 = vpop.permute.xlu0 %786
    %v788 = vsel %vm75, %v787, 0
    %790 = vmatpush.msra.mxu0 0.0
    %791 = vmatpush.msra.mxu0 0.0
    %792 = vmatpush.msra.mxu0 0.0
    %793 = vmatpush.msra.mxu0 0.0
    %794 = vmatpush.msra.mxu0 0.0
    %795 = vmatpush.msra.mxu0 0.0
    %796 = vmatpush.msra.mxu0 0.0
    %797 = vmatpush.msra.mxu0 0.0
    %798 = vmatpush.msra.mxu0 0.0
    %799 = vmatpush.msra.mxu0 0.0
    %800 = vmatpush.msra.mxu0 0.0
    %801 = vmatpush.msra.mxu0 0.0
    %802 = vmatpush.msra.mxu0 %v120
    %803 = vmatpush.msra.mxu0 %v119
    %804 = vmatpush.msra.mxu0 %v118
    %805 = vmatpush.msra.mxu0 %v117
    %806 = vmatmul.f32.gmra.mxu0 %v788
    %v807 = vpop.f32.mrf.mxu0
    %v808 = vadd.f32 0.0, %v807
    %809 = vdwg.mxu0
    %811 = vrot.lane.b32.xlu0 %v784, 64
    %v812 = vpop.permute.xlu0 %811
    %v813 = vsel %vm75, %v812, 0
    %815 = vmatpush.msra.mxu0 0.0
    %816 = vmatpush.msra.mxu0 0.0
    %817 = vmatpush.msra.mxu0 0.0
    %818 = vmatpush.msra.mxu0 0.0
    %819 = vmatpush.msra.mxu0 0.0
    %820 = vmatpush.msra.mxu0 0.0
    %821 = vmatpush.msra.mxu0 0.0
    %822 = vmatpush.msra.mxu0 0.0
    %823 = vmatpush.msra.mxu0 0.0
    %824 = vmatpush.msra.mxu0 0.0
    %825 = vmatpush.msra.mxu0 0.0
    %826 = vmatpush.msra.mxu0 0.0
    %827 = vmatpush.msra.mxu0 %v116
    %828 = vmatpush.msra.mxu0 %v115
    %829 = vmatpush.msra.mxu0 %v114
    %830 = vmatpush.msra.mxu0 %v113
    %831 = vmatmul.f32.gmra.mxu0 %v813
    %v832 = vpop.f32.mrf.mxu0
    %v833 = vadd.f32 %v808, %v832
    %834 = vdwg.mxu0
    %v835 = vadd.f32 %v833, %v111
    %v836 = vxor.u32 %v835, 2147483648
    %v837 = vmul.f32 %v836, 1.442695
    %v838 = vpow.pop %v837
    %v839 = vadd.f32 %v838, 1.0
    %v840 = vrcp.pop %v839
    %v841 = vmul.f32 %v839, %v840
    %v842 = vsub.f32 1.0, %v841
    %v843 = vmul.f32 %v840, %v842
    %v844 = vadd.f32 %v840, %v843
    %vm845 = vweird.f32 %v839
    %vm846 = vweird.f32 %v840
    %vm847 = vmor %vm845, %vm846
    %v848 = vsel %vm847, %v840, %v844
    %v849 = vand.u32 2147483647, %v839
    %vm850 = vcmp.eq.f32.partialorder %v849, 8.507059e+37
    %v851 = vand.u32 %v839, 2147483648
    %v852 = vor.u32 1.1754944e-38, %v851
    %v853 = vsel %vm850, %v852, %v848
    %v854 = vmul.f32 1.0, %v853
    %v855 = vtanh.pop %v835
    %v856 = vmul.f32 %v854, %v717
    %858 = vrot.lane.b32.xlu0 %v855, 32
    %v859 = vpop.permute.xlu0 %858
    %v861 = vmul.f32 %v854, %v859
    %863 = vrot.lane.b32.xlu0 %v861, 32
    %v864 = vpop.permute.xlu0 %863
    %v866 = vadd.f32 %v856, %v864
    %v867 = vtanh.pop %v866
    %869 = vrot.lane.b32.xlu0 %v867, 32
    %v870 = vpop.permute.xlu0 %869
    %v872 = vmul.f32 %v854, %v870
    %873 = vmatpush.msra.mxu0 0.0
    %874 = vmatpush.msra.mxu0 0.0
    %875 = vmatpush.msra.mxu0 0.0
    %876 = vmatpush.msra.mxu0 0.0
    %877 = vmatpush.msra.mxu0 0.0
    %878 = vmatpush.msra.mxu0 0.0
    %879 = vmatpush.msra.mxu0 0.0
    %880 = vmatpush.msra.mxu0 0.0
    %881 = vmatpush.msra.mxu0 0.0
    %882 = vmatpush.msra.mxu0 0.0
    %883 = vmatpush.msra.mxu0 0.0
    %884 = vmatpush.msra.mxu0 0.0
    %885 = vmatpush.msra.mxu0 %v108
    %886 = vmatpush.msra.mxu0 %v107
    %887 = vmatpush.msra.mxu0 %v106
    %888 = vmatpush.msra.mxu0 %v105
    %889 = vmatmul.f32.gmra.mxu0 %v813
    %v890 = vpop.f32.mrf.mxu0
    %v891 = vadd.f32 0.0, %v890
    %892 = vdwg.mxu0
    %v894 = vrot.slane %v891, 6
    %v896 = vadd.f32 %v103, %v894
    %v897 = vxor.u32 %v896, 2147483648
    %v898 = vmul.f32 %v897, 1.442695
    %v899 = vpow.pop %v898
    %v900 = vadd.f32 %v899, 1.0
    %v901 = vrcp.pop %v900
    %v902 = vmul.f32 %v900, %v901
    %v903 = vsub.f32 1.0, %v902
    %v904 = vmul.f32 %v901, %v903
    %v905 = vadd.f32 %v901, %v904
    %vm906 = vweird.f32 %v900
    %vm907 = vweird.f32 %v901
    %vm908 = vmor %vm906, %vm907
    %v909 = vsel %vm908, %v901, %v905
    %v910 = vand.u32 2147483647, %v900
    %vm911 = vcmp.eq.f32.partialorder %v910, 8.507059e+37
    %v912 = vand.u32 %v900, 2147483648
    %v913 = vor.u32 1.1754944e-38, %v912
    %v914 = vsel %vm911, %v913, %v909
    %v915 = vmul.f32 1.0, %v914
    %v916 = vtanh.pop %v896
    %v918 = vrot.slane %v778, 6
    %v920 = vmul.f32 %v915, %v918
    %922 = vrot.lane.b32.xlu0 %v916, 32
    %v923 = vpop.permute.xlu0 %922
    %v925 = vmul.f32 %v915, %v923
    %927 = vrot.lane.b32.xlu0 %v925, 32
    %v928 = vpop.permute.xlu0 %927
    %v930 = vadd.f32 %v920, %v928
    %v931 = vtanh.pop %v930
    %933 = vrot.lane.b32.xlu0 %v931, 32
    %v934 = vpop.permute.xlu0 %933
    %v936 = vmul.f32 %v915, %v934
    %938 = vrot.lane.b32.xlu0 %v872, 64
    %v939 = vpop.permute.xlu0 %938
    %v940 = vsel %vm75, %v939, 0
    %942 = vmatpush.msra.mxu0 0.0
    %943 = vmatpush.msra.mxu0 0.0
    %944 = vmatpush.msra.mxu0 0.0
    %945 = vmatpush.msra.mxu0 0.0
    %946 = vmatpush.msra.mxu0 0.0
    %947 = vmatpush.msra.mxu0 0.0
    %948 = vmatpush.msra.mxu0 0.0
    %949 = vmatpush.msra.mxu0 0.0
    %950 = vmatpush.msra.mxu0 0.0
    %951 = vmatpush.msra.mxu0 0.0
    %952 = vmatpush.msra.mxu0 0.0
    %953 = vmatpush.msra.mxu0 0.0
    %954 = vmatpush.msra.mxu0 %v120
    %955 = vmatpush.msra.mxu0 %v119
    %956 = vmatpush.msra.mxu0 %v118
    %957 = vmatpush.msra.mxu0 %v117
    %958 = vmatmul.f32.gmra.mxu0 %v940
    %v959 = vpop.f32.mrf.mxu0
    %v960 = vadd.f32 0.0, %v959
    %961 = vdwg.mxu0
    %v963 = vrot.slane %v936, 2
    %964 = vrot.lane.b32.xlu0 %v963, 64
    %v965 = vpop.permute.xlu0 %964
    %v966 = vsel %vm75, %v965, 0
    %968 = vmatpush.msra.mxu0 0.0
    %969 = vmatpush.msra.mxu0 0.0
    %970 = vmatpush.msra.mxu0 0.0
    %971 = vmatpush.msra.mxu0 0.0
    %972 = vmatpush.msra.mxu0 0.0
    %973 = vmatpush.msra.mxu0 0.0
    %974 = vmatpush.msra.mxu0 0.0
    %975 = vmatpush.msra.mxu0 0.0
    %976 = vmatpush.msra.mxu0 0.0
    %977 = vmatpush.msra.mxu0 0.0
    %978 = vmatpush.msra.mxu0 0.0
    %979 = vmatpush.msra.mxu0 0.0
    %980 = vmatpush.msra.mxu0 %v116
    %981 = vmatpush.msra.mxu0 %v115
    %982 = vmatpush.msra.mxu0 %v114
    %983 = vmatpush.msra.mxu0 %v113
    %984 = vmatmul.f32.gmra.mxu0 %v966
    %v985 = vpop.f32.mrf.mxu0
    %v986 = vadd.f32 %v960, %v985
    %987 = vdwg.mxu0
    %v988 = vadd.f32 %v986, %v111
    %v989 = vxor.u32 %v988, 2147483648
    %v990 = vmul.f32 %v989, 1.442695
    %v991 = vpow.pop %v990
    %v992 = vadd.f32 %v991, 1.0
    %v993 = vrcp.pop %v992
    %v994 = vmul.f32 %v992, %v993
    %v995 = vsub.f32 1.0, %v994
    %v996 = vmul.f32 %v993, %v995
    %v997 = vadd.f32 %v993, %v996
    %vm998 = vweird.f32 %v992
    %vm999 = vweird.f32 %v993
    %vm1000 = vmor %vm998, %vm999
    %v1001 = vsel %vm1000, %v993, %v997
    %v1002 = vand.u32 2147483647, %v992
    %vm1003 = vcmp.eq.f32.partialorder %v1002, 8.507059e+37
    %v1004 = vand.u32 %v992, 2147483648
    %v1005 = vor.u32 1.1754944e-38, %v1004
    %v1006 = vsel %vm1003, %v1005, %v1001
    %v1007 = vmul.f32 1.0, %v1006
    %v1008 = vtanh.pop %v988
    %v1009 = vmul.f32 %v1007, %v866
    %1011 = vrot.lane.b32.xlu0 %v1008, 32
    %v1012 = vpop.permute.xlu0 %1011
    %v1014 = vmul.f32 %v1007, %v1012
    %1016 = vrot.lane.b32.xlu0 %v1014, 32
    %v1017 = vpop.permute.xlu0 %1016
    %v1019 = vadd.f32 %v1009, %v1017
    %v1020 = vtanh.pop %v1019
    %1022 = vrot.lane.b32.xlu0 %v1020, 32
    %v1023 = vpop.permute.xlu0 %1022
    %v1025 = vmul.f32 %v1007, %v1023
    %1026 = vmatpush.msra.mxu0 0.0
    %1027 = vmatpush.msra.mxu0 0.0
    %1028 = vmatpush.msra.mxu0 0.0
    %1029 = vmatpush.msra.mxu0 0.0
    %1030 = vmatpush.msra.mxu0 0.0
    %1031 = vmatpush.msra.mxu0 0.0
    %1032 = vmatpush.msra.mxu0 0.0
    %1033 = vmatpush.msra.mxu0 0.0
    %1034 = vmatpush.msra.mxu0 0.0
    %1035 = vmatpush.msra.mxu0 0.0
    %1036 = vmatpush.msra.mxu0 0.0
    %1037 = vmatpush.msra.mxu0 0.0
    %1038 = vmatpush.msra.mxu0 %v108
    %1039 = vmatpush.msra.mxu0 %v107
    %1040 = vmatpush.msra.mxu0 %v106
    %1041 = vmatpush.msra.mxu0 %v105
    %1042 = vmatmul.f32.gmra.mxu0 %v966
    %v1043 = vpop.f32.mrf.mxu0
    %v1044 = vadd.f32 0.0, %v1043
    %1045 = vdwg.mxu0
    %v1047 = vrot.slane %v1044, 4
    %v1049 = vadd.f32 %v103, %v1047
    %v1050 = vxor.u32 %v1049, 2147483648
    %v1051 = vmul.f32 %v1050, 1.442695
    %v1052 = vpow.pop %v1051
    %v1053 = vadd.f32 %v1052, 1.0
    %v1054 = vrcp.pop %v1053
    %v1055 = vmul.f32 %v1053, %v1054
    %v1056 = vsub.f32 1.0, %v1055
    %v1057 = vmul.f32 %v1054, %v1056
    %v1058 = vadd.f32 %v1054, %v1057
    %vm1059 = vweird.f32 %v1053
    %vm1060 = vweird.f32 %v1054
    %vm1061 = vmor %vm1059, %vm1060
    %v1062 = vsel %vm1061, %v1054, %v1058
    %v1063 = vand.u32 2147483647, %v1053
    %vm1064 = vcmp.eq.f32.partialorder %v1063, 8.507059e+37
    %v1065 = vand.u32 %v1053, 2147483648
    %v1066 = vor.u32 1.1754944e-38, %v1065
    %v1067 = vsel %vm1064, %v1066, %v1062
    %v1068 = vmul.f32 1.0, %v1067
    %v1069 = vtanh.pop %v1049
    %v1071 = vrot.slane %v930, 6
    %v1073 = vmul.f32 %v1068, %v1071
    %1075 = vrot.lane.b32.xlu0 %v1069, 32
    %v1076 = vpop.permute.xlu0 %1075
    %v1078 = vmul.f32 %v1068, %v1076
    %1080 = vrot.lane.b32.xlu0 %v1078, 32
    %v1081 = vpop.permute.xlu0 %1080
    %v1083 = vadd.f32 %v1073, %v1081
    %v1084 = vtanh.pop %v1083
    %1086 = vrot.lane.b32.xlu0 %v1084, 32
    %v1087 = vpop.permute.xlu0 %1086
    %v1089 = vmul.f32 %v1068, %v1087
    %1091 = vrot.lane.b32.xlu0 %v1025, 64
    %v1092 = vpop.permute.xlu0 %1091
    %v1093 = vsel %vm75, %v1092, 0
    %1095 = vmatpush.msra.mxu0 0.0
    %1096 = vmatpush.msra.mxu0 0.0
    %1097 = vmatpush.msra.mxu0 0.0
    %1098 = vmatpush.msra.mxu0 0.0
    %1099 = vmatpush.msra.mxu0 0.0
    %1100 = vmatpush.msra.mxu0 0.0
    %1101 = vmatpush.msra.mxu0 0.0
    %1102 = vmatpush.msra.mxu0 0.0
    %1103 = vmatpush.msra.mxu0 0.0
    %1104 = vmatpush.msra.mxu0 0.0
    %1105 = vmatpush.msra.mxu0 0.0
    %1106 = vmatpush.msra.mxu0 0.0
    %1107 = vmatpush.msra.mxu0 %v120
    %1108 = vmatpush.msra.mxu0 %v119
    %1109 = vmatpush.msra.mxu0 %v118
    %1110 = vmatpush.msra.mxu0 %v117
    %1111 = vmatmul.f32.gmra.mxu0 %v1093
    %v1112 = vpop.f32.mrf.mxu0
    %v1113 = vadd.f32 0.0, %v1112
    %1114 = vdwg.mxu0
    %v1116 = vrot.slane %v1089, 4
    %1117 = vrot.lane.b32.xlu0 %v1116, 64
    %v1118 = vpop.permute.xlu0 %1117
    %v1119 = vsel %vm75, %v1118, 0
    %1121 = vmatpush.msra.mxu0 0.0
    %1122 = vmatpush.msra.mxu0 0.0
    %1123 = vmatpush.msra.mxu0 0.0
    %1124 = vmatpush.msra.mxu0 0.0
    %1125 = vmatpush.msra.mxu0 0.0
    %1126 = vmatpush.msra.mxu0 0.0
    %1127 = vmatpush.msra.mxu0 0.0
    %1128 = vmatpush.msra.mxu0 0.0
    %1129 = vmatpush.msra.mxu0 0.0
    %1130 = vmatpush.msra.mxu0 0.0
    %1131 = vmatpush.msra.mxu0 0.0
    %1132 = vmatpush.msra.mxu0 0.0
    %1133 = vmatpush.msra.mxu0 %v116
    %1134 = vmatpush.msra.mxu0 %v115
    %1135 = vmatpush.msra.mxu0 %v114
    %1136 = vmatpush.msra.mxu0 %v113
    %1137 = vmatmul.f32.gmra.mxu0 %v1119
    %v1138 = vpop.f32.mrf.mxu0
    %v1139 = vadd.f32 %v1113, %v1138
    %1140 = vdwg.mxu0
    %v1141 = vadd.f32 %v1139, %v111
    %v1142 = vxor.u32 %v1141, 2147483648
    %v1143 = vmul.f32 %v1142, 1.442695
    %v1144 = vpow.pop %v1143
    %v1145 = vadd.f32 %v1144, 1.0
    %v1146 = vrcp.pop %v1145
    %v1147 = vmul.f32 %v1145, %v1146
    %v1148 = vsub.f32 1.0, %v1147
    %v1149 = vmul.f32 %v1146, %v1148
    %v1150 = vadd.f32 %v1146, %v1149
    %vm1151 = vweird.f32 %v1145
    %vm1152 = vweird.f32 %v1146
    %vm1153 = vmor %vm1151, %vm1152
    %v1154 = vsel %vm1153, %v1146, %v1150
    %v1155 = vand.u32 2147483647, %v1145
    %vm1156 = vcmp.eq.f32.partialorder %v1155, 8.507059e+37
    %v1157 = vand.u32 %v1145, 2147483648
    %v1158 = vor.u32 1.1754944e-38, %v1157
    %v1159 = vsel %vm1156, %v1158, %v1154
    %v1160 = vmul.f32 1.0, %v1159
    %v1161 = vtanh.pop %v1141
    %v1162 = vmul.f32 %v1160, %v1019
    %1164 = vrot.lane.b32.xlu0 %v1161, 32
    %v1165 = vpop.permute.xlu0 %1164
    %v1167 = vmul.f32 %v1160, %v1165
    %1169 = vrot.lane.b32.xlu0 %v1167, 32
    %v1170 = vpop.permute.xlu0 %1169
    %v1172 = vadd.f32 %v1162, %v1170
    %v1173 = vtanh.pop %v1172
    %1175 = vrot.lane.b32.xlu0 %v1173, 32
    %v1176 = vpop.permute.xlu0 %1175
    %v1178 = vmul.f32 %v1160, %v1176
    %1179 = vmatpush.msra.mxu0 0.0
    %1180 = vmatpush.msra.mxu0 0.0
    %1181 = vmatpush.msra.mxu0 0.0
    %1182 = vmatpush.msra.mxu0 0.0
    %1183 = vmatpush.msra.mxu0 0.0
    %1184 = vmatpush.msra.mxu0 0.0
    %1185 = vmatpush.msra.mxu0 0.0
    %1186 = vmatpush.msra.mxu0 0.0
    %1187 = vmatpush.msra.mxu0 0.0
    %1188 = vmatpush.msra.mxu0 0.0
    %1189 = vmatpush.msra.mxu0 0.0
    %1190 = vmatpush.msra.mxu0 0.0
    %1191 = vmatpush.msra.mxu0 %v108
    %1192 = vmatpush.msra.mxu0 %v107
    %1193 = vmatpush.msra.mxu0 %v106
    %1194 = vmatpush.msra.mxu0 %v105
    %1195 = vmatmul.f32.gmra.mxu0 %v1119
    %v1196 = vpop.f32.mrf.mxu0
    %v1197 = vadd.f32 0.0, %v1196
    %1198 = vdwg.mxu0
    %v1200 = vrot.slane %v1197, 2
    %v1202 = vadd.f32 %v103, %v1200
    %v1203 = vxor.u32 %v1202, 2147483648
    %v1204 = vmul.f32 %v1203, 1.442695
    %v1205 = vpow.pop %v1204
    %v1206 = vadd.f32 %v1205, 1.0
    %v1207 = vrcp.pop %v1206
    %v1208 = vmul.f32 %v1206, %v1207
    %v1209 = vsub.f32 1.0, %v1208
    %v1210 = vmul.f32 %v1207, %v1209
    %v1211 = vadd.f32 %v1207, %v1210
    %vm1212 = vweird.f32 %v1206
    %vm1213 = vweird.f32 %v1207
    %vm1214 = vmor %vm1212, %vm1213
    %v1215 = vsel %vm1214, %v1207, %v1211
    %v1216 = vand.u32 2147483647, %v1206
    %vm1217 = vcmp.eq.f32.partialorder %v1216, 8.507059e+37
    %v1218 = vand.u32 %v1206, 2147483648
    %v1219 = vor.u32 1.1754944e-38, %v1218
    %v1220 = vsel %vm1217, %v1219, %v1215
    %v1221 = vmul.f32 1.0, %v1220
    %v1222 = vtanh.pop %v1202
    %v1224 = vrot.slane %v1083, 6
    %v1226 = vmul.f32 %v1221, %v1224
    %1228 = vrot.lane.b32.xlu0 %v1222, 32
    %v1229 = vpop.permute.xlu0 %1228
    %v1231 = vmul.f32 %v1221, %v1229
    %1233 = vrot.lane.b32.xlu0 %v1231, 32
    %v1234 = vpop.permute.xlu0 %1233
    %v1236 = vadd.f32 %v1226, %v1234
    %v1237 = vtanh.pop %v1236
    %1239 = vrot.lane.b32.xlu0 %v1237, 32
    %v1240 = vpop.permute.xlu0 %1239
    %v1242 = vmul.f32 %v1221, %v1240
    %1244 = vrot.lane.b32.xlu0 %v1178, 64
    %v1245 = vpop.permute.xlu0 %1244
    %v1246 = vsel %vm75, %v1245, 0
    %1248 = vmatpush.msra.mxu0 0.0
    %1249 = vmatpush.msra.mxu0 0.0
    %1250 = vmatpush.msra.mxu0 0.0
    %1251 = vmatpush.msra.mxu0 0.0
    %1252 = vmatpush.msra.mxu0 0.0
    %1253 = vmatpush.msra.mxu0 0.0
    %1254 = vmatpush.msra.mxu0 0.0
    %1255 = vmatpush.msra.mxu0 0.0
    %1256 = vmatpush.msra.mxu0 0.0
    %1257 = vmatpush.msra.mxu0 0.0
    %1258 = vmatpush.msra.mxu0 0.0
    %1259 = vmatpush.msra.mxu0 0.0
    %1260 = vmatpush.msra.mxu0 %v120
    %1261 = vmatpush.msra.mxu0 %v119
    %1262 = vmatpush.msra.mxu0 %v118
    %1263 = vmatpush.msra.mxu0 %v117
    %1264 = vmatmul.f32.gmra.mxu0 %v1246
    %v1265 = vpop.f32.mrf.mxu0
    %v1266 = vadd.f32 0.0, %v1265
    %1267 = vdwg.mxu0
    %v1269 = vrot.slane %v1242, 6
    %1270 = vrot.lane.b32.xlu0 %v1269, 64
    %v1271 = vpop.permute.xlu0 %1270
    %v1272 = vsel %vm75, %v1271, 0
    %1274 = vmatpush.msra.mxu0 0.0
    %1275 = vmatpush.msra.mxu0 0.0
    %1276 = vmatpush.msra.mxu0 0.0
    %1277 = vmatpush.msra.mxu0 0.0
    %1278 = vmatpush.msra.mxu0 0.0
    %1279 = vmatpush.msra.mxu0 0.0
    %1280 = vmatpush.msra.mxu0 0.0
    %1281 = vmatpush.msra.mxu0 0.0
    %1282 = vmatpush.msra.mxu0 0.0
    %1283 = vmatpush.msra.mxu0 0.0
    %1284 = vmatpush.msra.mxu0 0.0
    %1285 = vmatpush.msra.mxu0 0.0
    %1286 = vmatpush.msra.mxu0 %v116
    %1287 = vmatpush.msra.mxu0 %v115
    %1288 = vmatpush.msra.mxu0 %v114
    %1289 = vmatpush.msra.mxu0 %v113
    %1290 = vmatmul.f32.gmra.mxu0 %v1272
    %v1291 = vpop.f32.mrf.mxu0
    %v1292 = vadd.f32 %v1266, %v1291
    %1293 = vdwg.mxu0
    %v1294 = vadd.f32 %v1292, %v111
    %v1295 = vxor.u32 %v1294, 2147483648
    %v1296 = vmul.f32 %v1295, 1.442695
    %v1297 = vpow.pop %v1296
    %v1298 = vadd.f32 %v1297, 1.0
    %v1299 = vrcp.pop %v1298
    %v1300 = vmul.f32 %v1298, %v1299
    %v1301 = vsub.f32 1.0, %v1300
    %v1302 = vmul.f32 %v1299, %v1301
    %v1303 = vadd.f32 %v1299, %v1302
    %vm1304 = vweird.f32 %v1298
    %vm1305 = vweird.f32 %v1299
    %vm1306 = vmor %vm1304, %vm1305
    %v1307 = vsel %vm1306, %v1299, %v1303
    %v1308 = vand.u32 2147483647, %v1298
    %vm1309 = vcmp.eq.f32.partialorder %v1308, 8.507059e+37
    %v1310 = vand.u32 %v1298, 2147483648
    %v1311 = vor.u32 1.1754944e-38, %v1310
    %v1312 = vsel %vm1309, %v1311, %v1307
    %v1313 = vmul.f32 1.0, %v1312
    %v1314 = vtanh.pop %v1294
    %v1315 = vmul.f32 %v1313, %v1172
    %1317 = vrot.lane.b32.xlu0 %v1314, 32
    %v1318 = vpop.permute.xlu0 %1317
    %v1320 = vmul.f32 %v1313, %v1318
    %1322 = vrot.lane.b32.xlu0 %v1320, 32
    %v1323 = vpop.permute.xlu0 %1322
    %v1325 = vadd.f32 %v1315, %v1323
    %v1326 = vtanh.pop %v1325
    %1328 = vrot.lane.b32.xlu0 %v1326, 32
    %v1329 = vpop.permute.xlu0 %1328
    %v1331 = vmul.f32 %v1313, %v1329
    %v1332 = vld [vmem:[%s7] sm:$0xff]
    %v1333 = vld [vmem:[%s7 + $0x8] sm:$0xff]
    %v1334 = vld [vmem:[%s7 + $0x10] sm:$0xff]
    %v1335 = vld [vmem:[%s7 + $0x18] sm:$0xff]
    %v1336 = vld [vmem:[%s8] sm:$0x1]
    %v1338 = vperm.slane %v1336, 0
    %1341 = vrot.lane.b32.xlu0 %v1331, 64
    %v1342 = vpop.permute.xlu0 %1341
    %v1343 = vsel %vm75, %v1342, 0
    %1345 = vmatpush.msra.mxu0 0.0
    %1346 = vmatpush.msra.mxu0 0.0
    %1347 = vmatpush.msra.mxu0 0.0
    %1348 = vmatpush.msra.mxu0 0.0
    %1349 = vmatpush.msra.mxu0 0.0
    %1350 = vmatpush.msra.mxu0 0.0
    %1351 = vmatpush.msra.mxu0 0.0
    %1352 = vmatpush.msra.mxu0 0.0
    %1353 = vmatpush.msra.mxu0 0.0
    %1354 = vmatpush.msra.mxu0 0.0
    %1355 = vmatpush.msra.mxu0 0.0
    %1356 = vmatpush.msra.mxu0 0.0
    %1357 = vmatpush.msra.mxu0 %v1335
    %1358 = vmatpush.msra.mxu0 %v1334
    %1359 = vmatpush.msra.mxu0 %v1333
    %1360 = vmatpush.msra.mxu0 %v1332
    %1361 = vmatmul.f32.gmra.mxu0 %v1343
    %v1362 = vpop.f32.mrf.mxu0
    %v1363 = vadd.f32 %v1338, %v1362
    %1364 = vdwg.mxu0
    %vm1365 = vcmask 25600
    %1366 = vst.msk [vmem:[#allocation7] sm:$0x3] %vm1365, %v1363
    // Predicated region
    $region46: #{base_lstm_forward.1} parent=1 // pred_check
      _
    $region47: #{base_lstm_forward.1} parent=1 // pred_check_branch
      %1368 = sbr.rel (0) target = $region49
    $region48: #{base_lstm_forward.1} parent=1 // pred_region
      %1370 = vsyncadd [#allocation4], 0
      %s1372 = sshll.u32 [#allocation7], 4
      %s1373 = int_to_ptr.vmem [resolvable:$true] %s1372
      %s1374 = sshll.u32 %s9, 4
      %s1375 = int_to_ptr.hbm [resolvable:$true] %s1374
      %1377 = dma.vmem_to_hbm [thread:$0]  %s1373, 32, %s1375, [#allocation4]
    $region49: #{base_lstm_forward.1} parent=1 // pred_fallthru
      _
    // Predicated region
    $region50: #{base_lstm_forward.1} parent=1 // pred_check
      _
    $region51: #{base_lstm_forward.1} parent=1 // pred_check_branch
      %1379 = sbr.rel (0) target = $region53
    $region52: #{base_lstm_forward.1} parent=1 // pred_region
      %1381 = dma.done [#allocation4], 32
    $region53: #{base_lstm_forward.1} parent=1 // pred_fallthru
      _
    %1382 = vsyncpa [#allocation3], 1
    %1383 = vsyncpa [#allocation6], 1
    %1384 = vsyncpa [#allocation4], 1

</llo_original>
